<compile_context>
chip_gen: v7x
topology: tpu7x:2x2x1
jax: 0.10.0
libtpu: 0.0.40
codegen_flags: <defaults>
</compile_context>

<pallas_src>
import functools

import jax
import jax.numpy as jnp
from jax.experimental import pallas as pl
from jax.experimental.pallas import tpu as pltpu


def _round_up(v, m):
    return ((v + m - 1) // m) * m


def _gcn_layer_kernel(adj_ref, x_ref, wcat_ref, outs_ref, ins_ref, b_ref, o_ref, *,
                      n_etypes, width, relu):
    """One HeteroGraphConv(GraphConv) layer for a tile of dst rows.

    o[d] = sum_e in_s_e[d] * ( A_e[d, :] @ (out_s_e * (X @ W_e)) ) + sum_e b_e   (opt. ReLU)
    A stays raw 0/1 (bf16); normalization lives on the thin operands.
    """
    x = x_ref[...]                                                        # (Np, F) bf16
    # One batched feature matmul instead of E small ones (fewer MXU pushes / FIFO drains).
    # NOTE: recomputed per dst-row tile; at scale the O(E*N^2*width) A matmuls dominate this
    # O(N*F*E*width) term, so the redundancy is cheap and keeps the row axis fully parallel.
    xw = jnp.dot(x, wcat_ref[...], preferred_element_type=jnp.float32)    # (Np, E*width) f32

    tm = o_ref.shape[0]
    acc = jnp.zeros((tm, width), jnp.float32)
    for e in range(n_etypes):                                             # E tiny -> unrolled
        z = xw[:, e * width:(e + 1) * width] * outs_ref[e]                # (Np, width), src scale
        a = adj_ref[e]                                                    # (tm, Np) raw 0/1 bf16
        acc = acc + ins_ref[e] * jnp.dot(a, z.astype(jnp.bfloat16),
                                         preferred_element_type=jnp.float32)
    out = acc + b_ref[...]
    if relu:
        out = jnp.maximum(out, 0.0)
    o_ref[...] = out.astype(o_ref.dtype)


def _gcn_layer(adj_b, feats, wcat, out_s, in_s, bias, *, relu, out_dtype, tm):
    """Row-tiled pallas_call for one hetero GCN layer. adj_b: (E, Np, Np) bf16 raw 0/1."""
    E, Np, _ = adj_b.shape
    F = feats.shape[1]
    width = wcat.shape[1] // E
    steps = Np // tm

    # Advisory cost estimate for XLA scheduling around the custom call.
    flops = steps * 2 * Np * F * (E * width) + 2 * E * Np * Np * width
    bytes_accessed = (adj_b.size * 2 + feats.size * 2 + wcat.size * 2
                      + (out_s.size + in_s.size + bias.size) * 4
                      + Np * width * jnp.dtype(out_dtype).itemsize)

    # VMEM budget: double-buffered A tiles + resident thin operands + temporaries (+2x slack),
    # floored at the scoped default and capped below v7x's 64 MiB physical.
    adj_tile = E * tm * Np * 2
    resident = Np * F * 2 + F * E * width * 2 + E * Np * 4 + E * tm * 4 + width * 4
    temps = Np * E * width * 4 + tm * width * 4
    out_tile = tm * width * jnp.dtype(out_dtype).itemsize
    vmem_limit = int(min(max(2 * (2 * adj_tile + 2 * out_tile + resident + temps),
                             16 * 1024 * 1024),
                         48 * 1024 * 1024))

    kernel = functools.partial(_gcn_layer_kernel, n_etypes=E, width=width, relu=relu)
    return pl.pallas_call(
        kernel,
        out_shape=jax.ShapeDtypeStruct((Np, width), out_dtype),
        grid_spec=pltpu.PrefetchScalarGridSpec(
            num_scalar_prefetch=0,
            grid=(steps,),
            in_specs=[
                pl.BlockSpec((E, tm, Np), lambda i: (0, i, 0)),   # A dst-row tile (bf16, raw 0/1)
                pl.BlockSpec((Np, F), lambda i: (0, 0)),          # full src features (resident)
                pl.BlockSpec((F, E * width), lambda i: (0, 0)),   # concatenated padded weights
                pl.BlockSpec((E, Np, 1), lambda i: (0, 0, 0)),    # src D_out^-1/2 (full)
                pl.BlockSpec((E, tm, 1), lambda i: (0, i, 0)),    # dst D_in^-1/2 (row tile)
                pl.BlockSpec((1, width), lambda i: (0, 0)),       # sum_e b_e
            ],
            out_specs=pl.BlockSpec((tm, width), lambda i: (i, 0)),
        ),
        compiler_params=pltpu.CompilerParams(
            dimension_semantics=("parallel",),                    # rows split across TCs (v7x)
            vmem_limit_bytes=vmem_limit,
        ),
        cost_estimate=pl.CostEstimate(flops=flops, transcendentals=0,
                                      bytes_accessed=bytes_accessed),
    )(adj_b, feats, wcat, out_s, in_s, bias)


def hetero_gcn_forward(adj, x, w1, b1, w2, b2, *, tm=128):
    """adj: (E, N, N) raw 0/1, adj[e, dst, src]; x: (N, F_in);
    w1: (E, F_in, H), b1: (E, H); w2: (E, H, C), b2: (E, C).  Returns (N, C) logits."""
    E, N, _ = adj.shape
    F_in = x.shape[1]
    H = w1.shape[2]
    C = w2.shape[2]

    Np = _round_up(N, tm)            # pad dst/src nodes to the row tile (exact: padded A is zero)
    Hp = _round_up(H, 128)           # lane-dense hidden width
    Cp = _round_up(C, 128)           # lane-dense class width

    # --- wrapper-side prep (cheap XLA): degree scales, bf16 raw adjacency, padded operands ---
    in_deg = jnp.maximum(adj.sum(axis=2), 1.0)        # (E, N) in-degree of dst
    out_deg = jnp.maximum(adj.sum(axis=1), 1.0)       # (E, N) out-degree of src
    in_s = jnp.zeros((E, Np, 1), jnp.float32).at[:, :N, 0].set(jax.lax.rsqrt(in_deg))
    out_s = jnp.zeros((E, Np, 1), jnp.float32).at[:, :N, 0].set(jax.lax.rsqrt(out_deg))

    adj_b = jnp.zeros((E, Np, Np), jnp.bfloat16).at[:, :N, :N].set(adj.astype(jnp.bfloat16))
    xb = jnp.zeros((Np, F_in), jnp.bfloat16).at[:N, :].set(x.astype(jnp.bfloat16))

    # Concatenated, zero-padded per-etype weights -> one batched feature matmul per layer.
    w1cat = jnp.zeros((F_in, E * Hp), jnp.bfloat16)
    w2cat = jnp.zeros((Hp, E * Cp), jnp.bfloat16)
    for e in range(E):
        w1cat = w1cat.at[:, e * Hp:e * Hp + H].set(w1[e].astype(jnp.bfloat16))
        w2cat = w2cat.at[:H, e * Cp:e * Cp + C].set(w2[e].astype(jnp.bfloat16))
    # Bias hoist: 'sum' aggregation -> add sum_e b_e once per layer (exact).
    b1sum = jnp.zeros((1, Hp), jnp.float32).at[0, :H].set(b1.sum(axis=0).astype(jnp.float32))
    b2sum = jnp.zeros((1, Cp), jnp.float32).at[0, :C].set(b2.sum(axis=0).astype(jnp.float32))

    # Two row-tiled layer calls: H round-trips HBM (A read twice) so the row axis stays parallel.
    h = _gcn_layer(adj_b, xb, w1cat, out_s, in_s, b1sum,
                   relu=True, out_dtype=jnp.bfloat16, tm=tm)       # (Np, Hp)
    out = _gcn_layer(adj_b, h, w2cat, out_s, in_s, b2sum,
                     relu=False, out_dtype=jnp.float32, tm=tm)     # (Np, Cp)
    return out[:N, :C]


# ----------------------------- pure-JAX reference -----------------------------
def _ref_normalize(adj):
    in_deg = jnp.maximum(adj.sum(axis=2), 1.0)    # (E, N) in-degree of dst
    out_deg = jnp.maximum(adj.sum(axis=1), 1.0)   # (E, N) out-degree of src
    return adj * (in_deg[:, :, None] ** -0.5) * (out_deg[:, None, :] ** -0.5)


def _ref_layer(a_norm, x, w, b, relu):
    xw = jnp.einsum('nf,efg->eng', x, w, precision=jax.lax.Precision.HIGHEST)
    y = jnp.einsum('enm,emg->eng', a_norm, xw, precision=jax.lax.Precision.HIGHEST)
    y = y.sum(axis=0) + b.sum(axis=0)[None, :]
    return jnp.maximum(y, 0.0) if relu else y


def _ref_forward(adj, x, w1, b1, w2, b2):
    a_norm = _ref_normalize(adj)
    h = _ref_layer(a_norm, x, w1, b1, True)
    return _ref_layer(a_norm, h, w2, b2, False)


if __name__ == "__main__":
    # Small synthetic graph standing in for FraudYelp ('review' node type, 3 edge types).
    N = 256           # number of 'review' nodes (2 dst-row tiles -> exercises the parallel grid)
    E = 3             # edge types (net_rsr, net_rtr, net_rur)
    in_feats = 32
    hidden_feats = 16
    num_classes = 2

    key = jax.random.PRNGKey(0)
    k_adj, k_x, k_w1, k_b1, k_w2, k_b2 = jax.random.split(key, 6)

    adj = (jax.random.uniform(k_adj, (E, N, N)) < 0.1).astype(jnp.float32)
    x = jax.random.normal(k_x, (N, in_feats), dtype=jnp.float32)

    # Deterministic parameter init (one GraphConv per edge type, per layer).
    w1 = jax.random.normal(k_w1, (E, in_feats, hidden_feats), dtype=jnp.float32) * 0.1
    b1 = jax.random.normal(k_b1, (E, hidden_feats), dtype=jnp.float32) * 0.1
    w2 = jax.random.normal(k_w2, (E, hidden_feats, num_classes), dtype=jnp.float32) * 0.1
    b2 = jax.random.normal(k_b2, (E, num_classes), dtype=jnp.float32) * 0.1

    out = hetero_gcn_forward(adj, x, w1, b1, w2, b2)
    out = jax.block_until_ready(out)
    assert out.shape == (N, num_classes)

    out_ref = _ref_forward(adj, x, w1, b1, w2, b2)
    # bf16 MXU operands (exact for the 0/1 adjacency; rounded for features/weights) -> loosened
    # tolerance vs the f32-HIGHEST reference, as flagged in the review.
    assert jnp.allclose(out, out_ref, atol=1e-2, rtol=1e-2), "mismatch vs reference"

    print("KERNEL_OK")
</pallas_src>

<mosaic_0001>
module attributes {stable_mosaic.version = 11 : i64} {
  func.func @_gcn_layer_kernel(%arg0: i32, %arg1: memref<3x128x256xbf16, #tpu.memory_space<vmem>>, %arg2: memref<256x32xbf16, #tpu.memory_space<vmem>>, %arg3: memref<32x384xbf16, #tpu.memory_space<vmem>>, %arg4: memref<3x256x1xf32, #tpu.memory_space<vmem>>, %arg5: memref<3x128x1xf32, #tpu.memory_space<vmem>>, %arg6: memref<1x128xf32, #tpu.memory_space<vmem>>, %arg7: memref<128x128xbf16, #tpu.memory_space<vmem>>) attributes {dimension_semantics = [#tpu.dimension_semantics<parallel>], iteration_bounds = array<i64: 2>, scalar_prefetch = 0 : i64, scratch_operands = 0 : i64, tpu.core_type = #tpu.core_type<tc>, window_params = [{transform_indices = @transform_0, window_bounds = array<i64: 3, 128, 256>}, {pipeline_mode = #tpu.pipeline_mode<synchronous>, transform_indices = @transform_1, window_bounds = array<i64: 256, 32>}, {pipeline_mode = #tpu.pipeline_mode<synchronous>, transform_indices = @transform_2, window_bounds = array<i64: 32, 384>}, {pipeline_mode = #tpu.pipeline_mode<synchronous>, transform_indices = @transform_3, window_bounds = array<i64: 3, 256, 1>}, {transform_indices = @transform_4, window_bounds = array<i64: 3, 128, 1>}, {pipeline_mode = #tpu.pipeline_mode<synchronous>, transform_indices = @transform_5, window_bounds = array<i64: 1, 128>}, {transform_indices = @transform_6, window_bounds = array<i64: 128, 128>}]} {
    %c0 = arith.constant 0 : index
    %c0_0 = arith.constant 0 : index
    %0 = vector.load %arg2[%c0, %c0_0] : memref<256x32xbf16, #tpu.memory_space<vmem>>, vector<256x32xbf16>
    %c0_1 = arith.constant 0 : index
    %c0_2 = arith.constant 0 : index
    %1 = vector.load %arg3[%c0_1, %c0_2] : memref<32x384xbf16, #tpu.memory_space<vmem>>, vector<32x384xbf16>
    %cst = arith.constant dense<0.000000e+00> : vector<256x384xf32>
    %2 = tpu.matmul %0, %1, %cst {dimension_numbers = #tpu.dot_dimension_numbers<[1], [0], [0], [1], [0, 0, 1, 1], [], []>} : vector<256x32xbf16>, vector<32x384xbf16>, vector<256x384xf32> -> vector<256x384xf32>
    %cst_3 = arith.constant 0.000000e+00 : f32
    %3 = vector.broadcast %cst_3 : f32 to vector<128x128xf32>
    %4 = vector.extract_strided_slice %2 {offsets = [0, 0], sizes = [256, 128], strides = [1, 1]} : vector<256x384xf32> to vector<256x128xf32>
    %c0_4 = arith.constant 0 : index
    %c0_5 = arith.constant 0 : index
    %c0_6 = arith.constant 0 : index
    %5 = vector.load %arg4[%c0_4, %c0_5, %c0_6] : memref<3x256x1xf32, #tpu.memory_space<vmem>>, vector<1x256x1xf32>
    %6 = vector.shape_cast %5 : vector<1x256x1xf32> to vector<256x1xf32>
    %7 = vector.broadcast %6 : vector<256x1xf32> to vector<256x128xf32>
    %8 = arith.mulf %4, %7 : vector<256x128xf32>
    %c0_7 = arith.constant 0 : index
    %c0_8 = arith.constant 0 : index
    %c0_9 = arith.constant 0 : index
    %9 = vector.load %arg1[%c0_7, %c0_8, %c0_9] : memref<3x128x256xbf16, #tpu.memory_space<vmem>>, vector<1x128x256xbf16>
    %10 = vector.shape_cast %9 : vector<1x128x256xbf16> to vector<128x256xbf16>
    %c0_10 = arith.constant 0 : index
    %c0_11 = arith.constant 0 : index
    %c0_12 = arith.constant 0 : index
    %11 = vector.load %arg5[%c0_10, %c0_11, %c0_12] : memref<3x128x1xf32, #tpu.memory_space<vmem>>, vector<1x128x1xf32>
    %12 = vector.shape_cast %11 : vector<1x128x1xf32> to vector<128x1xf32>
    %13 = arith.truncf %8 : vector<256x128xf32> to vector<256x128xbf16>
    %cst_13 = arith.constant dense<0.000000e+00> : vector<128x128xf32>
    %14 = tpu.matmul %10, %13, %cst_13 {dimension_numbers = #tpu.dot_dimension_numbers<[1], [0], [0], [1], [0, 0, 1, 1], [], []>} : vector<128x256xbf16>, vector<256x128xbf16>, vector<128x128xf32> -> vector<128x128xf32>
    %15 = vector.broadcast %12 : vector<128x1xf32> to vector<128x128xf32>
    %16 = arith.mulf %15, %14 : vector<128x128xf32>
    %17 = arith.addf %3, %16 : vector<128x128xf32>
    %18 = vector.extract_strided_slice %2 {offsets = [0, 128], sizes = [256, 128], strides = [1, 1]} : vector<256x384xf32> to vector<256x128xf32>
    %c1 = arith.constant 1 : index
    %c0_14 = arith.constant 0 : index
    %c0_15 = arith.constant 0 : index
    %19 = vector.load %arg4[%c1, %c0_14, %c0_15] : memref<3x256x1xf32, #tpu.memory_space<vmem>>, vector<1x256x1xf32>
    %20 = vector.shape_cast %19 : vector<1x256x1xf32> to vector<256x1xf32>
    %21 = vector.broadcast %20 : vector<256x1xf32> to vector<256x128xf32>
    %22 = arith.mulf %18, %21 : vector<256x128xf32>
    %c1_16 = arith.constant 1 : index
    %c0_17 = arith.constant 0 : index
    %c0_18 = arith.constant 0 : index
    %23 = vector.load %arg1[%c1_16, %c0_17, %c0_18] : memref<3x128x256xbf16, #tpu.memory_space<vmem>>, vector<1x128x256xbf16>
    %24 = vector.shape_cast %23 : vector<1x128x256xbf16> to vector<128x256xbf16>
    %c1_19 = arith.constant 1 : index
    %c0_20 = arith.constant 0 : index
    %c0_21 = arith.constant 0 : index
    %25 = vector.load %arg5[%c1_19, %c0_20, %c0_21] : memref<3x128x1xf32, #tpu.memory_space<vmem>>, vector<1x128x1xf32>
    %26 = vector.shape_cast %25 : vector<1x128x1xf32> to vector<128x1xf32>
    %27 = arith.truncf %22 : vector<256x128xf32> to vector<256x128xbf16>
    %cst_22 = arith.constant dense<0.000000e+00> : vector<128x128xf32>
    %28 = tpu.matmul %24, %27, %cst_22 {dimension_numbers = #tpu.dot_dimension_numbers<[1], [0], [0], [1], [0, 0, 1, 1], [], []>} : vector<128x256xbf16>, vector<256x128xbf16>, vector<128x128xf32> -> vector<128x128xf32>
    %29 = vector.broadcast %26 : vector<128x1xf32> to vector<128x128xf32>
    %30 = arith.mulf %29, %28 : vector<128x128xf32>
    %31 = arith.addf %17, %30 : vector<128x128xf32>
    %32 = vector.extract_strided_slice %2 {offsets = [0, 256], sizes = [256, 128], strides = [1, 1]} : vector<256x384xf32> to vector<256x128xf32>
    %c2 = arith.constant 2 : index
    %c0_23 = arith.constant 0 : index
    %c0_24 = arith.constant 0 : index
    %33 = vector.load %arg4[%c2, %c0_23, %c0_24] : memref<3x256x1xf32, #tpu.memory_space<vmem>>, vector<1x256x1xf32>
    %34 = vector.shape_cast %33 : vector<1x256x1xf32> to vector<256x1xf32>
    %35 = vector.broadcast %34 : vector<256x1xf32> to vector<256x128xf32>
    %36 = arith.mulf %32, %35 : vector<256x128xf32>
    %c2_25 = arith.constant 2 : index
    %c0_26 = arith.constant 0 : index
    %c0_27 = arith.constant 0 : index
    %37 = vector.load %arg1[%c2_25, %c0_26, %c0_27] : memref<3x128x256xbf16, #tpu.memory_space<vmem>>, vector<1x128x256xbf16>
    %38 = vector.shape_cast %37 : vector<1x128x256xbf16> to vector<128x256xbf16>
    %c2_28 = arith.constant 2 : index
    %c0_29 = arith.constant 0 : index
    %c0_30 = arith.constant 0 : index
    %39 = vector.load %arg5[%c2_28, %c0_29, %c0_30] : memref<3x128x1xf32, #tpu.memory_space<vmem>>, vector<1x128x1xf32>
    %40 = vector.shape_cast %39 : vector<1x128x1xf32> to vector<128x1xf32>
    %41 = arith.truncf %36 : vector<256x128xf32> to vector<256x128xbf16>
    %cst_31 = arith.constant dense<0.000000e+00> : vector<128x128xf32>
    %42 = tpu.matmul %38, %41, %cst_31 {dimension_numbers = #tpu.dot_dimension_numbers<[1], [0], [0], [1], [0, 0, 1, 1], [], []>} : vector<128x256xbf16>, vector<256x128xbf16>, vector<128x128xf32> -> vector<128x128xf32>
    %43 = vector.broadcast %40 : vector<128x1xf32> to vector<128x128xf32>
    %44 = arith.mulf %43, %42 : vector<128x128xf32>
    %45 = arith.addf %31, %44 : vector<128x128xf32>
    %c0_32 = arith.constant 0 : index
    %c0_33 = arith.constant 0 : index
    %46 = vector.load %arg6[%c0_32, %c0_33] : memref<1x128xf32, #tpu.memory_space<vmem>>, vector<1x128xf32>
    %47 = vector.broadcast %46 : vector<1x128xf32> to vector<128x128xf32>
    %48 = arith.addf %45, %47 : vector<128x128xf32>
    %cst_34 = arith.constant 0.000000e+00 : f32
    %49 = vector.broadcast %cst_34 : f32 to vector<128x128xf32>
    %50 = arith.maximumf %48, %49 : vector<128x128xf32>
    %51 = arith.truncf %50 : vector<128x128xf32> to vector<128x128xbf16>
    %c0_35 = arith.constant 0 : index
    %c0_36 = arith.constant 0 : index
    %52 = vector.load %arg7[%c0_35, %c0_36] : memref<128x128xbf16, #tpu.memory_space<vmem>>, vector<128x128xbf16>
    tpu.vector_store %arg7[%c0_35, %c0_36], %51 {strides = array<i32>} : memref<128x128xbf16, #tpu.memory_space<vmem>>, vector<128x128xbf16>,
    return
  }
  func.func @transform_0(%arg0: i32) -> (i32, i32, i32) {
    %c0_i32 = arith.constant 0 : i32
    %c0_i32_0 = arith.constant 0 : i32
    %c0_i32_1 = arith.constant 0 : i32
    return %c0_i32, %arg0, %c0_i32_0 : i32, i32, i32
  }
  func.func @transform_1(%arg0: i32) -> (i32, i32) {
    %c0_i32 = arith.constant 0 : i32
    %c0_i32_0 = arith.constant 0 : i32
    %c0_i32_1 = arith.constant 0 : i32
    return %c0_i32, %c0_i32_0 : i32, i32
  }
  func.func @transform_2(%arg0: i32) -> (i32, i32) {
    %c0_i32 = arith.constant 0 : i32
    %c0_i32_0 = arith.constant 0 : i32
    %c0_i32_1 = arith.constant 0 : i32
    return %c0_i32, %c0_i32_0 : i32, i32
  }
  func.func @transform_3(%arg0: i32) -> (i32, i32, i32) {
    %c0_i32 = arith.constant 0 : i32
    %c0_i32_0 = arith.constant 0 : i32
    %c0_i32_1 = arith.constant 0 : i32
    %c0_i32_2 = arith.constant 0 : i32
    return %c0_i32, %c0_i32_0, %c0_i32_1 : i32, i32, i32
  }
  func.func @transform_4(%arg0: i32) -> (i32, i32, i32) {
    %c0_i32 = arith.constant 0 : i32
    %c0_i32_0 = arith.constant 0 : i32
    %c0_i32_1 = arith.constant 0 : i32
    return %c0_i32, %arg0, %c0_i32_0 : i32, i32, i32
  }
  func.func @transform_5(%arg0: i32) -> (i32, i32) {
    %c0_i32 = arith.constant 0 : i32
    %c0_i32_0 = arith.constant 0 : i32
    %c0_i32_1 = arith.constant 0 : i32
    return %c0_i32, %c0_i32_0 : i32, i32
  }
  func.func @transform_6(%arg0: i32) -> (i32, i32) {
    %c0_i32 = arith.constant 0 : i32
    %c0_i32_0 = arith.constant 0 : i32
    return %arg0, %c0_i32 : i32, i32
  }
}

</mosaic_0001>

<llo_original>
// kernel: tpu_custom_call.1
$region0: #{tpu_custom_call.1}
  #allocation0 [shape = 'u32[]', space=smem, size = 0x4, offset = 0x4, fixed_abs, tag = 'smem constant byte address 0x4 - core index']
  #allocation1 [shape = 'u32[144,128]{1,0:T(1,128)}', space=vmem, size = 0x12000, scoped, tag = 'internal scratch']
  %s0 = inlined_call_operand.vmem [shape: bf16[3,256,256], index: 0, kind: input, shape index: {}]
  %s1 = inlined_call_operand.vmem [shape: bf16[256,32], index: 1, kind: input, shape index: {}]
  %s2 = inlined_call_operand.vmem [shape: bf16[32,384], index: 2, kind: input, shape index: {}]
  %s3 = inlined_call_operand.vmem [shape: f32[3,256,1], index: 3, kind: input, shape index: {}]
  %s4 = inlined_call_operand.vmem [shape: f32[3,256,1], index: 4, kind: input, shape index: {}]
  %s5 = inlined_call_operand.vmem [shape: f32[1,128], index: 5, kind: input, shape index: {}]
  %s6 = inlined_call_operand.hbm [shape: bf16[256,128], index: 6, kind: output, shape index: {}]
  %s7 = sld [smem:[#allocation0]]
  $region133: #{tpu_custom_call.1} parent=0
    _
  %s9 = ssub.s32 1, %s7
  %s10 = scalar_select 0, %s9, %s7
  $region1: #{tpu_custom_call.1} parent=0
    #allocation2 [shape = 'u8[393216]{0}', space=vmem, size = 0x60000, scoped, tag = 'input window, operand 0']
    #allocation3 [shape = 'u8[393216]{0}', space=vmem, size = 0x60000, scoped, tag = 'input window, operand 4']
    #allocation4 [shape = 'u8[65536]{0}', space=vmem, size = 0x10000, scoped, tag = 'output window, operand 0']
    #allocation5 [shape = 's32[2]{0}', space=sflag, size = 0x8, scoped, tag = 'scoped memory for tpu_custom_call.1']
    %11 = vsyncpa [#allocation5], 0
    %s12 = scalar_lea.sflag [#allocation5], 1
    %13 = vsyncpa %s12, 0
    loop: start=0, step=1, limit=4
    $region2: #{tpu_custom_call.1} parent=1 // loop_pre_header
      _
    $region3: #{tpu_custom_call.1} parent=1 // loop_header
      %s15 = sphi 0, %s19
      %p16 = scmp.ge.s32.totalorder %s15, 4
      %s25 = sphi 0, %s27
      %s28 = sphi 0, %s25
      %s29 = sphi 0, %s28
      %s45 = sphi 0, %s29
      %s49 = sphi 0, %s49
      %s51 = sphi 0, %s49
      %s52 = sphi 0, %s51
      %s66 = sphi 0, %s52
      %s70 = sphi 0, %s70
      %s72 = sphi 0, %s70
      %s73 = sphi 0, %s72
      %s87 = sphi 0, %s73
      %s91 = sphi 0, %s91
      %s93 = sphi 0, %s91
      %s94 = sphi 0, %s93
      %s108 = sphi 0, %s94
      %s114 = sphi 0, %s116
      %s117 = sphi 0, %s114
      %s118 = sphi 0, %s117
      %s134 = sphi 0, %s118
      %s138 = sphi 0, %s138
      %s140 = sphi 0, %s138
      %s141 = sphi 0, %s140
      %s155 = sphi 0, %s141
      %s161 = sphi 0, %s163
      %s164 = sphi 0, %s161
      %s165 = sphi 0, %s164
      %s181 = sphi 0, %s165
    $region4: #{tpu_custom_call.1} parent=1 // loop_header_branch
      %18 = sbr.rel (%p16) target = $region8
    $region5: #{tpu_custom_call.1} parent=1 // loop_body
      %s20 = ssub.s32 %s15, 1
      %s21 = ssub.s32 %s15, 2
      %s22 = sadd.s32 %s15, 1
      %s23 = ssub.s32 %s15, %s22
      %p24 = scmp.eq.s32.totalorder %s23, 0
      %s26 = sadd.s32 %s25, 1
      %s27 = scalar_select %p24, %s25, %s26
      %p30 = pneg %p24
      %p31 = scmp.eq.s32.totalorder %s15, 1
      %p32 = por %p30, %p31
      %p33 = scmp.ne.s32.totalorder %s25, %s28
      %p34 = scmp.eq.s32.totalorder %s15, 0
      %p35 = por %p33, %p34
      %p36 = scmp.ne.s32.totalorder %s25, %s28
      %p37 = scmp.eq.s32.totalorder %s20, 1
      %p38 = por %p36, %p37
      %p39 = scmp.ne.s32.totalorder %s28, %s29
      %p40 = scmp.eq.s32.totalorder %s20, 0
      %p41 = por %p39, %p40
      %p42 = scmp.ne.s32.totalorder %s28, %s29
      %p43 = scmp.eq.s32.totalorder %s21, 1
      %p44 = por %p42, %p43
      %p46 = scmp.ne.s32.totalorder %s29, %s45
      %p47 = scmp.eq.s32.totalorder %s21, 0
      %p48 = por %p46, %p47
      %s50 = sadd.s32 %s49, 1
      %p53 = scmp.eq.s32.totalorder %s15, 1
      %p54 = scmp.ne.s32.totalorder %s49, %s51
      %p55 = scmp.eq.s32.totalorder %s15, 0
      %p56 = por %p54, %p55
      %p57 = scmp.ne.s32.totalorder %s49, %s51
      %p58 = scmp.eq.s32.totalorder %s20, 1
      %p59 = por %p57, %p58
      %p60 = scmp.ne.s32.totalorder %s51, %s52
      %p61 = scmp.eq.s32.totalorder %s20, 0
      %p62 = por %p60, %p61
      %p63 = scmp.ne.s32.totalorder %s51, %s52
      %p64 = scmp.eq.s32.totalorder %s21, 1
      %p65 = por %p63, %p64
      %p67 = scmp.ne.s32.totalorder %s52, %s66
      %p68 = scmp.eq.s32.totalorder %s21, 0
      %p69 = por %p67, %p68
      %s71 = sadd.s32 %s70, 1
      %p74 = scmp.eq.s32.totalorder %s15, 1
      %p75 = scmp.ne.s32.totalorder %s70, %s72
      %p76 = scmp.eq.s32.totalorder %s15, 0
      %p77 = por %p75, %p76
      %p78 = scmp.ne.s32.totalorder %s70, %s72
      %p79 = scmp.eq.s32.totalorder %s20, 1
      %p80 = por %p78, %p79
      %p81 = scmp.ne.s32.totalorder %s72, %s73
      %p82 = scmp.eq.s32.totalorder %s20, 0
      %p83 = por %p81, %p82
      %p84 = scmp.ne.s32.totalorder %s72, %s73
      %p85 = scmp.eq.s32.totalorder %s21, 1
      %p86 = por %p84, %p85
      %p88 = scmp.ne.s32.totalorder %s73, %s87
      %p89 = scmp.eq.s32.totalorder %s21, 0
      %p90 = por %p88, %p89
      %s92 = sadd.s32 %s91, 1
      %p95 = scmp.eq.s32.totalorder %s15, 1
      %p96 = scmp.ne.s32.totalorder %s91, %s93
      %p97 = scmp.eq.s32.totalorder %s15, 0
      %p98 = por %p96, %p97
      %p99 = scmp.ne.s32.totalorder %s91, %s93
      %p100 = scmp.eq.s32.totalorder %s20, 1
      %p101 = por %p99, %p100
      %p102 = scmp.ne.s32.totalorder %s93, %s94
      %p103 = scmp.eq.s32.totalorder %s20, 0
      %p104 = por %p102, %p103
      %p105 = scmp.ne.s32.totalorder %s93, %s94
      %p106 = scmp.eq.s32.totalorder %s21, 1
      %p107 = por %p105, %p106
      %p109 = scmp.ne.s32.totalorder %s94, %s108
      %p110 = scmp.eq.s32.totalorder %s21, 0
      %p111 = por %p109, %p110
      %s112 = ssub.s32 %s15, %s22
      %p113 = scmp.eq.s32.totalorder %s112, 0
      %s115 = sadd.s32 %s114, 1
      %s116 = scalar_select %p113, %s114, %s115
      %p119 = pneg %p113
      %p120 = scmp.eq.s32.totalorder %s15, 1
      %p121 = por %p119, %p120
      %p122 = scmp.ne.s32.totalorder %s114, %s117
      %p123 = scmp.eq.s32.totalorder %s15, 0
      %p124 = por %p122, %p123
      %p125 = scmp.ne.s32.totalorder %s114, %s117
      %p126 = scmp.eq.s32.totalorder %s20, 1
      %p127 = por %p125, %p126
      %p128 = scmp.ne.s32.totalorder %s117, %s118
      %p129 = scmp.eq.s32.totalorder %s20, 0
      %p130 = por %p128, %p129
      %p131 = scmp.ne.s32.totalorder %s117, %s118
      %p132 = scmp.eq.s32.totalorder %s21, 1
      %p133 = por %p131, %p132
      %p135 = scmp.ne.s32.totalorder %s118, %s134
      %p136 = scmp.eq.s32.totalorder %s21, 0
      %p137 = por %p135, %p136
      %s139 = sadd.s32 %s138, 1
      %p142 = scmp.eq.s32.totalorder %s15, 1
      %p143 = scmp.ne.s32.totalorder %s138, %s140
      %p144 = scmp.eq.s32.totalorder %s15, 0
      %p145 = por %p143, %p144
      %p146 = scmp.ne.s32.totalorder %s138, %s140
      %p147 = scmp.eq.s32.totalorder %s20, 1
      %p148 = por %p146, %p147
      %p149 = scmp.ne.s32.totalorder %s140, %s141
      %p150 = scmp.eq.s32.totalorder %s20, 0
      %p151 = por %p149, %p150
      %p152 = scmp.ne.s32.totalorder %s140, %s141
      %p153 = scmp.eq.s32.totalorder %s21, 1
      %p154 = por %p152, %p153
      %p156 = scmp.ne.s32.totalorder %s141, %s155
      %p157 = scmp.eq.s32.totalorder %s21, 0
      %p158 = por %p156, %p157
      %s159 = ssub.s32 %s15, %s22
      %p160 = scmp.eq.s32.totalorder %s159, 0
      %s162 = sadd.s32 %s161, 1
      %s163 = scalar_select %p160, %s161, %s162
      %p166 = pneg %p160
      %p167 = scmp.eq.s32.totalorder %s15, 1
      %p168 = por %p166, %p167
      %p169 = scmp.ne.s32.totalorder %s161, %s164
      %p170 = scmp.eq.s32.totalorder %s15, 0
      %p171 = por %p169, %p170
      %p172 = scmp.ne.s32.totalorder %s161, %s164
      %p173 = scmp.eq.s32.totalorder %s20, 1
      %p174 = por %p172, %p173
      %p175 = scmp.ne.s32.totalorder %s164, %s165
      %p176 = scmp.eq.s32.totalorder %s20, 0
      %p177 = por %p175, %p176
      %p178 = scmp.ne.s32.totalorder %s164, %s165
      %p179 = scmp.eq.s32.totalorder %s21, 1
      %p180 = por %p178, %p179
      %p182 = scmp.ne.s32.totalorder %s165, %s181
      %p183 = scmp.eq.s32.totalorder %s21, 0
      %p184 = por %p182, %p183
      %p185 = scmp.le.s32.totalorder 1, %s15
      %p186 = scmp.lt.s32.totalorder %s15, 3
      %p187 = pnand %p185, %p186
      %p188 = pneg %p187
      // Predicated region
      $region9: #{tpu_custom_call.1} parent=5 // pred_check
        _
      $region10: #{tpu_custom_call.1} parent=5 // pred_check_branch
        %190 = sbr.rel (%p187) target = $region12
      $region11: #{tpu_custom_call.1} parent=5 // pred_region
        %s191 = ssub.s32 %s15, 1
        // Predicated region
        $region13: #{tpu_custom_call.1} parent=11 // pred_check
          %p192 = pneg %p62
        $region14: #{tpu_custom_call.1} parent=11 // pred_check_branch
          %194 = sbr.rel (%p192) target = $region16
        $region15: #{tpu_custom_call.1} parent=11 // pred_region
          _
        $region16: #{tpu_custom_call.1} parent=11 // pred_fallthru
          _
        // Predicated region
        $region17: #{tpu_custom_call.1} parent=11 // pred_check
          %p195 = pneg %p83
        $region18: #{tpu_custom_call.1} parent=11 // pred_check_branch
          %197 = sbr.rel (%p195) target = $region20
        $region19: #{tpu_custom_call.1} parent=11 // pred_region
          _
        $region20: #{tpu_custom_call.1} parent=11 // pred_fallthru
          _
        // Predicated region
        $region21: #{tpu_custom_call.1} parent=11 // pred_check
          %p198 = pneg %p104
        $region22: #{tpu_custom_call.1} parent=11 // pred_check_branch
          %200 = sbr.rel (%p198) target = $region24
        $region23: #{tpu_custom_call.1} parent=11 // pred_region
          _
        $region24: #{tpu_custom_call.1} parent=11 // pred_fallthru
          _
        // Predicated region
        $region25: #{tpu_custom_call.1} parent=11 // pred_check
          %p201 = pneg %p151
        $region26: #{tpu_custom_call.1} parent=11 // pred_check_branch
          %203 = sbr.rel (%p201) target = $region28
        $region27: #{tpu_custom_call.1} parent=11 // pred_region
          _
        $region28: #{tpu_custom_call.1} parent=11 // pred_fallthru
          _
      $region12: #{tpu_custom_call.1} parent=5 // pred_fallthru
        _
      %p204 = scmp.lt.s32.totalorder %s15, 2
      // Predicated region
      $region29: #{tpu_custom_call.1} parent=5 // pred_check
        %p205 = pneg %p204
      $region30: #{tpu_custom_call.1} parent=5 // pred_check_branch
        %207 = sbr.rel (%p205) target = $region32
      $region31: #{tpu_custom_call.1} parent=5 // pred_region
        // Predicated region
        $region33: #{tpu_custom_call.1} parent=31 // pred_check
          %p208 = pneg %p35
        $region34: #{tpu_custom_call.1} parent=31 // pred_check_branch
          %210 = sbr.rel (%p208) target = $region36
        $region35: #{tpu_custom_call.1} parent=31 // pred_region
          %s211 = sand.u32 %s25, 1
          %s212 = sand.u32 %s25, 1
          %s213 = smul.addr %s212, 384
          %s214 = scalar_lea.vmem [#allocation2], %s213
          %s215 = smul.u32 16, %s15
          %s216 = smul.addr %s215, 2
          %s217 = smul.addr %s216, 4
          %s218 = scalar_lea.vmem %s0, %s217
          // Predicated region
          $region37: #{tpu_custom_call.1} parent=35 // pred_check
            _
          $region38: #{tpu_custom_call.1} parent=35 // pred_check_branch
            %220 = sbr.rel (0) target = $region40
          $region39: #{tpu_custom_call.1} parent=35 // pred_region
            // Predicated region
            $region41: #{tpu_custom_call.1} parent=39 // pred_check
              _
            $region42: #{tpu_custom_call.1} parent=39 // pred_check_branch
              %222 = sbr.rel (0) target = $region44
            $region43: #{tpu_custom_call.1} parent=39 // pred_region
              // Predicated region
              $region56: #{tpu_custom_call.1} parent=43 // pred_check
                _
              $region57: #{tpu_custom_call.1} parent=43 // pred_check_branch
                %331 = sbr.rel (0) target = $region59
              $region58: #{tpu_custom_call.1} parent=43 // pred_region
                loop: start=0, step=1, limit=1
                $region60: #{tpu_custom_call.1} parent=58 // loop_pre_header
                  _
                $region61: #{tpu_custom_call.1} parent=58 // loop_header
                  %s333 = sphi 0, %s337
                  %p334 = scmp.ge.s32.totalorder %s333, 1
                  %s338 = sphi %s218, %s218
                  %s339 = sphi %s214, %s214
                $region62: #{tpu_custom_call.1} parent=58 // loop_header_branch
                  %336 = sbr.rel (%p334) target = $region66
                $region63: #{tpu_custom_call.1} parent=58 // loop_body
                  %v340 = vld [vmem:[%s338] sm:$0xff]
                  %341 = vst [vmem:[%s339] sm:$0xff] %v340
                  %v342 = vld [vmem:[%s338 + $0x8] sm:$0xff]
                  %343 = vst [vmem:[%s339 + $0x8] sm:$0xff] %v342
                  %v344 = vld [vmem:[%s338 + $0x10] sm:$0xff]
                  %345 = vst [vmem:[%s339 + $0x10] sm:$0xff] %v344
                  %v346 = vld [vmem:[%s338 + $0x18] sm:$0xff]
                  %347 = vst [vmem:[%s339 + $0x18] sm:$0xff] %v346
                  %v348 = vld [vmem:[%s338 + $0x20] sm:$0xff]
                  %349 = vst [vmem:[%s339 + $0x20] sm:$0xff] %v348
                  %v350 = vld [vmem:[%s338 + $0x28] sm:$0xff]
                  %351 = vst [vmem:[%s339 + $0x28] sm:$0xff] %v350
                  %v352 = vld [vmem:[%s338 + $0x30] sm:$0xff]
                  %353 = vst [vmem:[%s339 + $0x30] sm:$0xff] %v352
                  %v354 = vld [vmem:[%s338 + $0x38] sm:$0xff]
                  %355 = vst [vmem:[%s339 + $0x38] sm:$0xff] %v354
                  %v356 = vld [vmem:[%s338 + $0x40] sm:$0xff]
                  %357 = vst [vmem:[%s339 + $0x40] sm:$0xff] %v356
                  %v358 = vld [vmem:[%s338 + $0x48] sm:$0xff]
                  %359 = vst [vmem:[%s339 + $0x48] sm:$0xff] %v358
                  %v360 = vld [vmem:[%s338 + $0x50] sm:$0xff]
                  %361 = vst [vmem:[%s339 + $0x50] sm:$0xff] %v360
                  %v362 = vld [vmem:[%s338 + $0x58] sm:$0xff]
                  %363 = vst [vmem:[%s339 + $0x58] sm:$0xff] %v362
                  %v364 = vld [vmem:[%s338 + $0x60] sm:$0xff]
                  %365 = vst [vmem:[%s339 + $0x60] sm:$0xff] %v364
                  %v366 = vld [vmem:[%s338 + $0x68] sm:$0xff]
                  %367 = vst [vmem:[%s339 + $0x68] sm:$0xff] %v366
                  %v368 = vld [vmem:[%s338 + $0x70] sm:$0xff]
                  %369 = vst [vmem:[%s339 + $0x70] sm:$0xff] %v368
                  %v370 = vld [vmem:[%s338 + $0x78] sm:$0xff]
                  %371 = vst [vmem:[%s339 + $0x78] sm:$0xff] %v370
                  %v372 = vld [vmem:[%s338 + $0x100] sm:$0xff]
                  %373 = vst [vmem:[%s339 + $0x80] sm:$0xff] %v372
                  %v374 = vld [vmem:[%s338 + $0x108] sm:$0xff]
                  %375 = vst [vmem:[%s339 + $0x88] sm:$0xff] %v374
                  %v376 = vld [vmem:[%s338 + $0x110] sm:$0xff]
                  %377 = vst [vmem:[%s339 + $0x90] sm:$0xff] %v376
                  %v378 = vld [vmem:[%s338 + $0x118] sm:$0xff]
                  %379 = vst [vmem:[%s339 + $0x98] sm:$0xff] %v378
                  %v380 = vld [vmem:[%s338 + $0x120] sm:$0xff]
                  %381 = vst [vmem:[%s339 + $0xa0] sm:$0xff] %v380
                  %v382 = vld [vmem:[%s338 + $0x128] sm:$0xff]
                  %383 = vst [vmem:[%s339 + $0xa8] sm:$0xff] %v382
                  %v384 = vld [vmem:[%s338 + $0x130] sm:$0xff]
                  %385 = vst [vmem:[%s339 + $0xb0] sm:$0xff] %v384
                  %v386 = vld [vmem:[%s338 + $0x138] sm:$0xff]
                  %387 = vst [vmem:[%s339 + $0xb8] sm:$0xff] %v386
                  %v388 = vld [vmem:[%s338 + $0x140] sm:$0xff]
                  %389 = vst [vmem:[%s339 + $0xc0] sm:$0xff] %v388
                  %v390 = vld [vmem:[%s338 + $0x148] sm:$0xff]
                  %391 = vst [vmem:[%s339 + $0xc8] sm:$0xff] %v390
                  %v392 = vld [vmem:[%s338 + $0x150] sm:$0xff]
                  %393 = vst [vmem:[%s339 + $0xd0] sm:$0xff] %v392
                  %v394 = vld [vmem:[%s338 + $0x158] sm:$0xff]
                  %395 = vst [vmem:[%s339 + $0xd8] sm:$0xff] %v394
                  %v396 = vld [vmem:[%s338 + $0x160] sm:$0xff]
                  %397 = vst [vmem:[%s339 + $0xe0] sm:$0xff] %v396
                  %v398 = vld [vmem:[%s338 + $0x168] sm:$0xff]
                  %399 = vst [vmem:[%s339 + $0xe8] sm:$0xff] %v398
                  %v400 = vld [vmem:[%s338 + $0x170] sm:$0xff]
                  %401 = vst [vmem:[%s339 + $0xf0] sm:$0xff] %v400
                  %v402 = vld [vmem:[%s338 + $0x178] sm:$0xff]
                  %403 = vst [vmem:[%s339 + $0xf8] sm:$0xff] %v402
                  %v404 = vld [vmem:[%s338 + $0x200] sm:$0xff]
                  %405 = vst [vmem:[%s339 + $0x100] sm:$0xff] %v404
                  %v406 = vld [vmem:[%s338 + $0x208] sm:$0xff]
                  %407 = vst [vmem:[%s339 + $0x108] sm:$0xff] %v406
                  %v408 = vld [vmem:[%s338 + $0x210] sm:$0xff]
                  %409 = vst [vmem:[%s339 + $0x110] sm:$0xff] %v408
                  %v410 = vld [vmem:[%s338 + $0x218] sm:$0xff]
                  %411 = vst [vmem:[%s339 + $0x118] sm:$0xff] %v410
                  %v412 = vld [vmem:[%s338 + $0x220] sm:$0xff]
                  %413 = vst [vmem:[%s339 + $0x120] sm:$0xff] %v412
                  %v414 = vld [vmem:[%s338 + $0x228] sm:$0xff]
                  %415 = vst [vmem:[%s339 + $0x128] sm:$0xff] %v414
                  %v416 = vld [vmem:[%s338 + $0x230] sm:$0xff]
                  %417 = vst [vmem:[%s339 + $0x130] sm:$0xff] %v416
                  %v418 = vld [vmem:[%s338 + $0x238] sm:$0xff]
                  %419 = vst [vmem:[%s339 + $0x138] sm:$0xff] %v418
                  %v420 = vld [vmem:[%s338 + $0x240] sm:$0xff]
                  %421 = vst [vmem:[%s339 + $0x140] sm:$0xff] %v420
                  %v422 = vld [vmem:[%s338 + $0x248] sm:$0xff]
                  %423 = vst [vmem:[%s339 + $0x148] sm:$0xff] %v422
                  %v424 = vld [vmem:[%s338 + $0x250] sm:$0xff]
                  %425 = vst [vmem:[%s339 + $0x150] sm:$0xff] %v424
                  %v426 = vld [vmem:[%s338 + $0x258] sm:$0xff]
                  %427 = vst [vmem:[%s339 + $0x158] sm:$0xff] %v426
                  %v428 = vld [vmem:[%s338 + $0x260] sm:$0xff]
                  %429 = vst [vmem:[%s339 + $0x160] sm:$0xff] %v428
                  %v430 = vld [vmem:[%s338 + $0x268] sm:$0xff]
                  %431 = vst [vmem:[%s339 + $0x168] sm:$0xff] %v430
                  %v432 = vld [vmem:[%s338 + $0x270] sm:$0xff]
                  %433 = vst [vmem:[%s339 + $0x170] sm:$0xff] %v432
                  %v434 = vld [vmem:[%s338 + $0x278] sm:$0xff]
                  %435 = vst [vmem:[%s339 + $0x178] sm:$0xff] %v434
                $region64: #{tpu_custom_call.1} parent=58 // loop_footer
                  %s337 = sadd.s32 1, %s333
                $region65: #{tpu_custom_call.1} parent=58 // loop_footer_branch
                  %332 = sbr.rel target = $region61
                $region66: #{tpu_custom_call.1} parent=58 // loop_exit
                  _
              $region59: #{tpu_custom_call.1} parent=43 // pred_fallthru
                _
              // Predicated region
              $region67: #{tpu_custom_call.1} parent=43 // pred_check
                _
              $region68: #{tpu_custom_call.1} parent=43 // pred_check_branch
                %437 = sbr.rel target = $region70
              $region69: #{tpu_custom_call.1} parent=43 // pred_region
                _
              $region70: #{tpu_custom_call.1} parent=43 // pred_fallthru
                _
            $region44: #{tpu_custom_call.1} parent=39 // pred_fallthru
              _
            // Predicated region
            $region45: #{tpu_custom_call.1} parent=39 // pred_check
              _
            $region46: #{tpu_custom_call.1} parent=39 // pred_check_branch
              %224 = sbr.rel target = $region48
            $region47: #{tpu_custom_call.1} parent=39 // pred_region
              loop: start=0, step=1, limit=1
              $region49: #{tpu_custom_call.1} parent=47 // loop_pre_header
                _
              $region50: #{tpu_custom_call.1} parent=47 // loop_header
                %s227 = sphi 0, %s231
                %p228 = scmp.ge.s32.totalorder %s227, 1
                %s232 = sphi %s218, %s218
                %s233 = sphi %s214, %s214
              $region51: #{tpu_custom_call.1} parent=47 // loop_header_branch
                %230 = sbr.rel (%p228) target = $region55
              $region52: #{tpu_custom_call.1} parent=47 // loop_body
                %v234 = vld [vmem:[%s232] sm:$0xff]
                %235 = vst [vmem:[%s233] sm:$0xff] %v234
                %v236 = vld [vmem:[%s232 + $0x8] sm:$0xff]
                %237 = vst [vmem:[%s233 + $0x8] sm:$0xff] %v236
                %v238 = vld [vmem:[%s232 + $0x10] sm:$0xff]
                %239 = vst [vmem:[%s233 + $0x10] sm:$0xff] %v238
                %v240 = vld [vmem:[%s232 + $0x18] sm:$0xff]
                %241 = vst [vmem:[%s233 + $0x18] sm:$0xff] %v240
                %v242 = vld [vmem:[%s232 + $0x20] sm:$0xff]
                %243 = vst [vmem:[%s233 + $0x20] sm:$0xff] %v242
                %v244 = vld [vmem:[%s232 + $0x28] sm:$0xff]
                %245 = vst [vmem:[%s233 + $0x28] sm:$0xff] %v244
                %v246 = vld [vmem:[%s232 + $0x30] sm:$0xff]
                %247 = vst [vmem:[%s233 + $0x30] sm:$0xff] %v246
                %v248 = vld [vmem:[%s232 + $0x38] sm:$0xff]
                %249 = vst [vmem:[%s233 + $0x38] sm:$0xff] %v248
                %v250 = vld [vmem:[%s232 + $0x40] sm:$0xff]
                %251 = vst [vmem:[%s233 + $0x40] sm:$0xff] %v250
                %v252 = vld [vmem:[%s232 + $0x48] sm:$0xff]
                %253 = vst [vmem:[%s233 + $0x48] sm:$0xff] %v252
                %v254 = vld [vmem:[%s232 + $0x50] sm:$0xff]
                %255 = vst [vmem:[%s233 + $0x50] sm:$0xff] %v254
                %v256 = vld [vmem:[%s232 + $0x58] sm:$0xff]
                %257 = vst [vmem:[%s233 + $0x58] sm:$0xff] %v256
                %v258 = vld [vmem:[%s232 + $0x60] sm:$0xff]
                %259 = vst [vmem:[%s233 + $0x60] sm:$0xff] %v258
                %v260 = vld [vmem:[%s232 + $0x68] sm:$0xff]
                %261 = vst [vmem:[%s233 + $0x68] sm:$0xff] %v260
                %v262 = vld [vmem:[%s232 + $0x70] sm:$0xff]
                %263 = vst [vmem:[%s233 + $0x70] sm:$0xff] %v262
                %v264 = vld [vmem:[%s232 + $0x78] sm:$0xff]
                %265 = vst [vmem:[%s233 + $0x78] sm:$0xff] %v264
                %v266 = vld [vmem:[%s232 + $0x100] sm:$0xff]
                %267 = vst [vmem:[%s233 + $0x80] sm:$0xff] %v266
                %v268 = vld [vmem:[%s232 + $0x108] sm:$0xff]
                %269 = vst [vmem:[%s233 + $0x88] sm:$0xff] %v268
                %v270 = vld [vmem:[%s232 + $0x110] sm:$0xff]
                %271 = vst [vmem:[%s233 + $0x90] sm:$0xff] %v270
                %v272 = vld [vmem:[%s232 + $0x118] sm:$0xff]
                %273 = vst [vmem:[%s233 + $0x98] sm:$0xff] %v272
                %v274 = vld [vmem:[%s232 + $0x120] sm:$0xff]
                %275 = vst [vmem:[%s233 + $0xa0] sm:$0xff] %v274
                %v276 = vld [vmem:[%s232 + $0x128] sm:$0xff]
                %277 = vst [vmem:[%s233 + $0xa8] sm:$0xff] %v276
                %v278 = vld [vmem:[%s232 + $0x130] sm:$0xff]
                %279 = vst [vmem:[%s233 + $0xb0] sm:$0xff] %v278
                %v280 = vld [vmem:[%s232 + $0x138] sm:$0xff]
                %281 = vst [vmem:[%s233 + $0xb8] sm:$0xff] %v280
                %v282 = vld [vmem:[%s232 + $0x140] sm:$0xff]
                %283 = vst [vmem:[%s233 + $0xc0] sm:$0xff] %v282
                %v284 = vld [vmem:[%s232 + $0x148] sm:$0xff]
                %285 = vst [vmem:[%s233 + $0xc8] sm:$0xff] %v284
                %v286 = vld [vmem:[%s232 + $0x150] sm:$0xff]
                %287 = vst [vmem:[%s233 + $0xd0] sm:$0xff] %v286
                %v288 = vld [vmem:[%s232 + $0x158] sm:$0xff]
                %289 = vst [vmem:[%s233 + $0xd8] sm:$0xff] %v288
                %v290 = vld [vmem:[%s232 + $0x160] sm:$0xff]
                %291 = vst [vmem:[%s233 + $0xe0] sm:$0xff] %v290
                %v292 = vld [vmem:[%s232 + $0x168] sm:$0xff]
                %293 = vst [vmem:[%s233 + $0xe8] sm:$0xff] %v292
                %v294 = vld [vmem:[%s232 + $0x170] sm:$0xff]
                %295 = vst [vmem:[%s233 + $0xf0] sm:$0xff] %v294
                %v296 = vld [vmem:[%s232 + $0x178] sm:$0xff]
                %297 = vst [vmem:[%s233 + $0xf8] sm:$0xff] %v296
                %v298 = vld [vmem:[%s232 + $0x200] sm:$0xff]
                %299 = vst [vmem:[%s233 + $0x100] sm:$0xff] %v298
                %v300 = vld [vmem:[%s232 + $0x208] sm:$0xff]
                %301 = vst [vmem:[%s233 + $0x108] sm:$0xff] %v300
                %v302 = vld [vmem:[%s232 + $0x210] sm:$0xff]
                %303 = vst [vmem:[%s233 + $0x110] sm:$0xff] %v302
                %v304 = vld [vmem:[%s232 + $0x218] sm:$0xff]
                %305 = vst [vmem:[%s233 + $0x118] sm:$0xff] %v304
                %v306 = vld [vmem:[%s232 + $0x220] sm:$0xff]
                %307 = vst [vmem:[%s233 + $0x120] sm:$0xff] %v306
                %v308 = vld [vmem:[%s232 + $0x228] sm:$0xff]
                %309 = vst [vmem:[%s233 + $0x128] sm:$0xff] %v308
                %v310 = vld [vmem:[%s232 + $0x230] sm:$0xff]
                %311 = vst [vmem:[%s233 + $0x130] sm:$0xff] %v310
                %v312 = vld [vmem:[%s232 + $0x238] sm:$0xff]
                %313 = vst [vmem:[%s233 + $0x138] sm:$0xff] %v312
                %v314 = vld [vmem:[%s232 + $0x240] sm:$0xff]
                %315 = vst [vmem:[%s233 + $0x140] sm:$0xff] %v314
                %v316 = vld [vmem:[%s232 + $0x248] sm:$0xff]
                %317 = vst [vmem:[%s233 + $0x148] sm:$0xff] %v316
                %v318 = vld [vmem:[%s232 + $0x250] sm:$0xff]
                %319 = vst [vmem:[%s233 + $0x150] sm:$0xff] %v318
                %v320 = vld [vmem:[%s232 + $0x258] sm:$0xff]
                %321 = vst [vmem:[%s233 + $0x158] sm:$0xff] %v320
                %v322 = vld [vmem:[%s232 + $0x260] sm:$0xff]
                %323 = vst [vmem:[%s233 + $0x160] sm:$0xff] %v322
                %v324 = vld [vmem:[%s232 + $0x268] sm:$0xff]
                %325 = vst [vmem:[%s233 + $0x168] sm:$0xff] %v324
                %v326 = vld [vmem:[%s232 + $0x270] sm:$0xff]
                %327 = vst [vmem:[%s233 + $0x170] sm:$0xff] %v326
                %v328 = vld [vmem:[%s232 + $0x278] sm:$0xff]
                %329 = vst [vmem:[%s233 + $0x178] sm:$0xff] %v328
              $region53: #{tpu_custom_call.1} parent=47 // loop_footer
                %s231 = sadd.s32 1, %s227
              $region54: #{tpu_custom_call.1} parent=47 // loop_footer_branch
                %226 = sbr.rel target = $region50
              $region55: #{tpu_custom_call.1} parent=47 // loop_exit
                _
            $region48: #{tpu_custom_call.1} parent=39 // pred_fallthru
              _
          $region40: #{tpu_custom_call.1} parent=35 // pred_fallthru
            _
          %438 = vnop
        $region36: #{tpu_custom_call.1} parent=31 // pred_fallthru
          _
        // Predicated region
        $region71: #{tpu_custom_call.1} parent=31 // pred_check
          %p439 = pneg %p124
        $region72: #{tpu_custom_call.1} parent=31 // pred_check_branch
          %441 = sbr.rel (%p439) target = $region74
        $region73: #{tpu_custom_call.1} parent=31 // pred_region
          %s442 = sand.u32 %s114, 1
          %s443 = sand.u32 %s114, 1
          %s444 = smul.addr %s443, 384
          %s445 = scalar_lea.vmem [#allocation3], %s444
          %s446 = smul.u32 16, %s15
          %s447 = smul.addr %s446, 8
          %s448 = scalar_lea.vmem %s4, %s447
          // Predicated region
          $region75: #{tpu_custom_call.1} parent=73 // pred_check
            _
          $region76: #{tpu_custom_call.1} parent=73 // pred_check_branch
            %450 = sbr.rel (0) target = $region78
          $region77: #{tpu_custom_call.1} parent=73 // pred_region
            // Predicated region
            $region79: #{tpu_custom_call.1} parent=77 // pred_check
              _
            $region80: #{tpu_custom_call.1} parent=77 // pred_check_branch
              %452 = sbr.rel (0) target = $region82
            $region81: #{tpu_custom_call.1} parent=77 // pred_region
              // Predicated region
              $region94: #{tpu_custom_call.1} parent=81 // pred_check
                _
              $region95: #{tpu_custom_call.1} parent=81 // pred_check_branch
                %561 = sbr.rel (0) target = $region97
              $region96: #{tpu_custom_call.1} parent=81 // pred_region
                loop: start=0, step=1, limit=1
                $region98: #{tpu_custom_call.1} parent=96 // loop_pre_header
                  _
                $region99: #{tpu_custom_call.1} parent=96 // loop_header
                  %s563 = sphi 0, %s567
                  %p564 = scmp.ge.s32.totalorder %s563, 1
                  %s568 = sphi %s448, %s448
                  %s569 = sphi %s445, %s445
                $region100: #{tpu_custom_call.1} parent=96 // loop_header_branch
                  %566 = sbr.rel (%p564) target = $region104
                $region101: #{tpu_custom_call.1} parent=96 // loop_body
                  %v570 = vld [vmem:[%s568] sm:$0xff]
                  %571 = vst [vmem:[%s569] sm:$0xff] %v570
                  %v572 = vld [vmem:[%s568 + $0x8] sm:$0xff]
                  %573 = vst [vmem:[%s569 + $0x8] sm:$0xff] %v572
                  %v574 = vld [vmem:[%s568 + $0x10] sm:$0xff]
                  %575 = vst [vmem:[%s569 + $0x10] sm:$0xff] %v574
                  %v576 = vld [vmem:[%s568 + $0x18] sm:$0xff]
                  %577 = vst [vmem:[%s569 + $0x18] sm:$0xff] %v576
                  %v578 = vld [vmem:[%s568 + $0x20] sm:$0xff]
                  %579 = vst [vmem:[%s569 + $0x20] sm:$0xff] %v578
                  %v580 = vld [vmem:[%s568 + $0x28] sm:$0xff]
                  %581 = vst [vmem:[%s569 + $0x28] sm:$0xff] %v580
                  %v582 = vld [vmem:[%s568 + $0x30] sm:$0xff]
                  %583 = vst [vmem:[%s569 + $0x30] sm:$0xff] %v582
                  %v584 = vld [vmem:[%s568 + $0x38] sm:$0xff]
                  %585 = vst [vmem:[%s569 + $0x38] sm:$0xff] %v584
                  %v586 = vld [vmem:[%s568 + $0x40] sm:$0xff]
                  %587 = vst [vmem:[%s569 + $0x40] sm:$0xff] %v586
                  %v588 = vld [vmem:[%s568 + $0x48] sm:$0xff]
                  %589 = vst [vmem:[%s569 + $0x48] sm:$0xff] %v588
                  %v590 = vld [vmem:[%s568 + $0x50] sm:$0xff]
                  %591 = vst [vmem:[%s569 + $0x50] sm:$0xff] %v590
                  %v592 = vld [vmem:[%s568 + $0x58] sm:$0xff]
                  %593 = vst [vmem:[%s569 + $0x58] sm:$0xff] %v592
                  %v594 = vld [vmem:[%s568 + $0x60] sm:$0xff]
                  %595 = vst [vmem:[%s569 + $0x60] sm:$0xff] %v594
                  %v596 = vld [vmem:[%s568 + $0x68] sm:$0xff]
                  %597 = vst [vmem:[%s569 + $0x68] sm:$0xff] %v596
                  %v598 = vld [vmem:[%s568 + $0x70] sm:$0xff]
                  %599 = vst [vmem:[%s569 + $0x70] sm:$0xff] %v598
                  %v600 = vld [vmem:[%s568 + $0x78] sm:$0xff]
                  %601 = vst [vmem:[%s569 + $0x78] sm:$0xff] %v600
                  %v602 = vld [vmem:[%s568 + $0x100] sm:$0xff]
                  %603 = vst [vmem:[%s569 + $0x80] sm:$0xff] %v602
                  %v604 = vld [vmem:[%s568 + $0x108] sm:$0xff]
                  %605 = vst [vmem:[%s569 + $0x88] sm:$0xff] %v604
                  %v606 = vld [vmem:[%s568 + $0x110] sm:$0xff]
                  %607 = vst [vmem:[%s569 + $0x90] sm:$0xff] %v606
                  %v608 = vld [vmem:[%s568 + $0x118] sm:$0xff]
                  %609 = vst [vmem:[%s569 + $0x98] sm:$0xff] %v608
                  %v610 = vld [vmem:[%s568 + $0x120] sm:$0xff]
                  %611 = vst [vmem:[%s569 + $0xa0] sm:$0xff] %v610
                  %v612 = vld [vmem:[%s568 + $0x128] sm:$0xff]
                  %613 = vst [vmem:[%s569 + $0xa8] sm:$0xff] %v612
                  %v614 = vld [vmem:[%s568 + $0x130] sm:$0xff]
                  %615 = vst [vmem:[%s569 + $0xb0] sm:$0xff] %v614
                  %v616 = vld [vmem:[%s568 + $0x138] sm:$0xff]
                  %617 = vst [vmem:[%s569 + $0xb8] sm:$0xff] %v616
                  %v618 = vld [vmem:[%s568 + $0x140] sm:$0xff]
                  %619 = vst [vmem:[%s569 + $0xc0] sm:$0xff] %v618
                  %v620 = vld [vmem:[%s568 + $0x148] sm:$0xff]
                  %621 = vst [vmem:[%s569 + $0xc8] sm:$0xff] %v620
                  %v622 = vld [vmem:[%s568 + $0x150] sm:$0xff]
                  %623 = vst [vmem:[%s569 + $0xd0] sm:$0xff] %v622
                  %v624 = vld [vmem:[%s568 + $0x158] sm:$0xff]
                  %625 = vst [vmem:[%s569 + $0xd8] sm:$0xff] %v624
                  %v626 = vld [vmem:[%s568 + $0x160] sm:$0xff]
                  %627 = vst [vmem:[%s569 + $0xe0] sm:$0xff] %v626
                  %v628 = vld [vmem:[%s568 + $0x168] sm:$0xff]
                  %629 = vst [vmem:[%s569 + $0xe8] sm:$0xff] %v628
                  %v630 = vld [vmem:[%s568 + $0x170] sm:$0xff]
                  %631 = vst [vmem:[%s569 + $0xf0] sm:$0xff] %v630
                  %v632 = vld [vmem:[%s568 + $0x178] sm:$0xff]
                  %633 = vst [vmem:[%s569 + $0xf8] sm:$0xff] %v632
                  %v634 = vld [vmem:[%s568 + $0x200] sm:$0xff]
                  %635 = vst [vmem:[%s569 + $0x100] sm:$0xff] %v634
                  %v636 = vld [vmem:[%s568 + $0x208] sm:$0xff]
                  %637 = vst [vmem:[%s569 + $0x108] sm:$0xff] %v636
                  %v638 = vld [vmem:[%s568 + $0x210] sm:$0xff]
                  %639 = vst [vmem:[%s569 + $0x110] sm:$0xff] %v638
                  %v640 = vld [vmem:[%s568 + $0x218] sm:$0xff]
                  %641 = vst [vmem:[%s569 + $0x118] sm:$0xff] %v640
                  %v642 = vld [vmem:[%s568 + $0x220] sm:$0xff]
                  %643 = vst [vmem:[%s569 + $0x120] sm:$0xff] %v642
                  %v644 = vld [vmem:[%s568 + $0x228] sm:$0xff]
                  %645 = vst [vmem:[%s569 + $0x128] sm:$0xff] %v644
                  %v646 = vld [vmem:[%s568 + $0x230] sm:$0xff]
                  %647 = vst [vmem:[%s569 + $0x130] sm:$0xff] %v646
                  %v648 = vld [vmem:[%s568 + $0x238] sm:$0xff]
                  %649 = vst [vmem:[%s569 + $0x138] sm:$0xff] %v648
                  %v650 = vld [vmem:[%s568 + $0x240] sm:$0xff]
                  %651 = vst [vmem:[%s569 + $0x140] sm:$0xff] %v650
                  %v652 = vld [vmem:[%s568 + $0x248] sm:$0xff]
                  %653 = vst [vmem:[%s569 + $0x148] sm:$0xff] %v652
                  %v654 = vld [vmem:[%s568 + $0x250] sm:$0xff]
                  %655 = vst [vmem:[%s569 + $0x150] sm:$0xff] %v654
                  %v656 = vld [vmem:[%s568 + $0x258] sm:$0xff]
                  %657 = vst [vmem:[%s569 + $0x158] sm:$0xff] %v656
                  %v658 = vld [vmem:[%s568 + $0x260] sm:$0xff]
                  %659 = vst [vmem:[%s569 + $0x160] sm:$0xff] %v658
                  %v660 = vld [vmem:[%s568 + $0x268] sm:$0xff]
                  %661 = vst [vmem:[%s569 + $0x168] sm:$0xff] %v660
                  %v662 = vld [vmem:[%s568 + $0x270] sm:$0xff]
                  %663 = vst [vmem:[%s569 + $0x170] sm:$0xff] %v662
                  %v664 = vld [vmem:[%s568 + $0x278] sm:$0xff]
                  %665 = vst [vmem:[%s569 + $0x178] sm:$0xff] %v664
                $region102: #{tpu_custom_call.1} parent=96 // loop_footer
                  %s567 = sadd.s32 1, %s563
                $region103: #{tpu_custom_call.1} parent=96 // loop_footer_branch
                  %562 = sbr.rel target = $region99
                $region104: #{tpu_custom_call.1} parent=96 // loop_exit
                  _
              $region97: #{tpu_custom_call.1} parent=81 // pred_fallthru
                _
              // Predicated region
              $region105: #{tpu_custom_call.1} parent=81 // pred_check
                _
              $region106: #{tpu_custom_call.1} parent=81 // pred_check_branch
                %667 = sbr.rel target = $region108
              $region107: #{tpu_custom_call.1} parent=81 // pred_region
                _
              $region108: #{tpu_custom_call.1} parent=81 // pred_fallthru
                _
            $region82: #{tpu_custom_call.1} parent=77 // pred_fallthru
              _
            // Predicated region
            $region83: #{tpu_custom_call.1} parent=77 // pred_check
              _
            $region84: #{tpu_custom_call.1} parent=77 // pred_check_branch
              %454 = sbr.rel target = $region86
            $region85: #{tpu_custom_call.1} parent=77 // pred_region
              loop: start=0, step=1, limit=1
              $region87: #{tpu_custom_call.1} parent=85 // loop_pre_header
                _
              $region88: #{tpu_custom_call.1} parent=85 // loop_header
                %s457 = sphi 0, %s461
                %p458 = scmp.ge.s32.totalorder %s457, 1
                %s462 = sphi %s448, %s448
                %s463 = sphi %s445, %s445
              $region89: #{tpu_custom_call.1} parent=85 // loop_header_branch
                %460 = sbr.rel (%p458) target = $region93
              $region90: #{tpu_custom_call.1} parent=85 // loop_body
                %v464 = vld [vmem:[%s462] sm:$0xff]
                %465 = vst [vmem:[%s463] sm:$0xff] %v464
                %v466 = vld [vmem:[%s462 + $0x8] sm:$0xff]
                %467 = vst [vmem:[%s463 + $0x8] sm:$0xff] %v466
                %v468 = vld [vmem:[%s462 + $0x10] sm:$0xff]
                %469 = vst [vmem:[%s463 + $0x10] sm:$0xff] %v468
                %v470 = vld [vmem:[%s462 + $0x18] sm:$0xff]
                %471 = vst [vmem:[%s463 + $0x18] sm:$0xff] %v470
                %v472 = vld [vmem:[%s462 + $0x20] sm:$0xff]
                %473 = vst [vmem:[%s463 + $0x20] sm:$0xff] %v472
                %v474 = vld [vmem:[%s462 + $0x28] sm:$0xff]
                %475 = vst [vmem:[%s463 + $0x28] sm:$0xff] %v474
                %v476 = vld [vmem:[%s462 + $0x30] sm:$0xff]
                %477 = vst [vmem:[%s463 + $0x30] sm:$0xff] %v476
                %v478 = vld [vmem:[%s462 + $0x38] sm:$0xff]
                %479 = vst [vmem:[%s463 + $0x38] sm:$0xff] %v478
                %v480 = vld [vmem:[%s462 + $0x40] sm:$0xff]
                %481 = vst [vmem:[%s463 + $0x40] sm:$0xff] %v480
                %v482 = vld [vmem:[%s462 + $0x48] sm:$0xff]
                %483 = vst [vmem:[%s463 + $0x48] sm:$0xff] %v482
                %v484 = vld [vmem:[%s462 + $0x50] sm:$0xff]
                %485 = vst [vmem:[%s463 + $0x50] sm:$0xff] %v484
                %v486 = vld [vmem:[%s462 + $0x58] sm:$0xff]
                %487 = vst [vmem:[%s463 + $0x58] sm:$0xff] %v486
                %v488 = vld [vmem:[%s462 + $0x60] sm:$0xff]
                %489 = vst [vmem:[%s463 + $0x60] sm:$0xff] %v488
                %v490 = vld [vmem:[%s462 + $0x68] sm:$0xff]
                %491 = vst [vmem:[%s463 + $0x68] sm:$0xff] %v490
                %v492 = vld [vmem:[%s462 + $0x70] sm:$0xff]
                %493 = vst [vmem:[%s463 + $0x70] sm:$0xff] %v492
                %v494 = vld [vmem:[%s462 + $0x78] sm:$0xff]
                %495 = vst [vmem:[%s463 + $0x78] sm:$0xff] %v494
                %v496 = vld [vmem:[%s462 + $0x100] sm:$0xff]
                %497 = vst [vmem:[%s463 + $0x80] sm:$0xff] %v496
                %v498 = vld [vmem:[%s462 + $0x108] sm:$0xff]
                %499 = vst [vmem:[%s463 + $0x88] sm:$0xff] %v498
                %v500 = vld [vmem:[%s462 + $0x110] sm:$0xff]
                %501 = vst [vmem:[%s463 + $0x90] sm:$0xff] %v500
                %v502 = vld [vmem:[%s462 + $0x118] sm:$0xff]
                %503 = vst [vmem:[%s463 + $0x98] sm:$0xff] %v502
                %v504 = vld [vmem:[%s462 + $0x120] sm:$0xff]
                %505 = vst [vmem:[%s463 + $0xa0] sm:$0xff] %v504
                %v506 = vld [vmem:[%s462 + $0x128] sm:$0xff]
                %507 = vst [vmem:[%s463 + $0xa8] sm:$0xff] %v506
                %v508 = vld [vmem:[%s462 + $0x130] sm:$0xff]
                %509 = vst [vmem:[%s463 + $0xb0] sm:$0xff] %v508
                %v510 = vld [vmem:[%s462 + $0x138] sm:$0xff]
                %511 = vst [vmem:[%s463 + $0xb8] sm:$0xff] %v510
                %v512 = vld [vmem:[%s462 + $0x140] sm:$0xff]
                %513 = vst [vmem:[%s463 + $0xc0] sm:$0xff] %v512
                %v514 = vld [vmem:[%s462 + $0x148] sm:$0xff]
                %515 = vst [vmem:[%s463 + $0xc8] sm:$0xff] %v514
                %v516 = vld [vmem:[%s462 + $0x150] sm:$0xff]
                %517 = vst [vmem:[%s463 + $0xd0] sm:$0xff] %v516
                %v518 = vld [vmem:[%s462 + $0x158] sm:$0xff]
                %519 = vst [vmem:[%s463 + $0xd8] sm:$0xff] %v518
                %v520 = vld [vmem:[%s462 + $0x160] sm:$0xff]
                %521 = vst [vmem:[%s463 + $0xe0] sm:$0xff] %v520
                %v522 = vld [vmem:[%s462 + $0x168] sm:$0xff]
                %523 = vst [vmem:[%s463 + $0xe8] sm:$0xff] %v522
                %v524 = vld [vmem:[%s462 + $0x170] sm:$0xff]
                %525 = vst [vmem:[%s463 + $0xf0] sm:$0xff] %v524
                %v526 = vld [vmem:[%s462 + $0x178] sm:$0xff]
                %527 = vst [vmem:[%s463 + $0xf8] sm:$0xff] %v526
                %v528 = vld [vmem:[%s462 + $0x200] sm:$0xff]
                %529 = vst [vmem:[%s463 + $0x100] sm:$0xff] %v528
                %v530 = vld [vmem:[%s462 + $0x208] sm:$0xff]
                %531 = vst [vmem:[%s463 + $0x108] sm:$0xff] %v530
                %v532 = vld [vmem:[%s462 + $0x210] sm:$0xff]
                %533 = vst [vmem:[%s463 + $0x110] sm:$0xff] %v532
                %v534 = vld [vmem:[%s462 + $0x218] sm:$0xff]
                %535 = vst [vmem:[%s463 + $0x118] sm:$0xff] %v534
                %v536 = vld [vmem:[%s462 + $0x220] sm:$0xff]
                %537 = vst [vmem:[%s463 + $0x120] sm:$0xff] %v536
                %v538 = vld [vmem:[%s462 + $0x228] sm:$0xff]
                %539 = vst [vmem:[%s463 + $0x128] sm:$0xff] %v538
                %v540 = vld [vmem:[%s462 + $0x230] sm:$0xff]
                %541 = vst [vmem:[%s463 + $0x130] sm:$0xff] %v540
                %v542 = vld [vmem:[%s462 + $0x238] sm:$0xff]
                %543 = vst [vmem:[%s463 + $0x138] sm:$0xff] %v542
                %v544 = vld [vmem:[%s462 + $0x240] sm:$0xff]
                %545 = vst [vmem:[%s463 + $0x140] sm:$0xff] %v544
                %v546 = vld [vmem:[%s462 + $0x248] sm:$0xff]
                %547 = vst [vmem:[%s463 + $0x148] sm:$0xff] %v546
                %v548 = vld [vmem:[%s462 + $0x250] sm:$0xff]
                %549 = vst [vmem:[%s463 + $0x150] sm:$0xff] %v548
                %v550 = vld [vmem:[%s462 + $0x258] sm:$0xff]
                %551 = vst [vmem:[%s463 + $0x158] sm:$0xff] %v550
                %v552 = vld [vmem:[%s462 + $0x260] sm:$0xff]
                %553 = vst [vmem:[%s463 + $0x160] sm:$0xff] %v552
                %v554 = vld [vmem:[%s462 + $0x268] sm:$0xff]
                %555 = vst [vmem:[%s463 + $0x168] sm:$0xff] %v554
                %v556 = vld [vmem:[%s462 + $0x270] sm:$0xff]
                %557 = vst [vmem:[%s463 + $0x170] sm:$0xff] %v556
                %v558 = vld [vmem:[%s462 + $0x278] sm:$0xff]
                %559 = vst [vmem:[%s463 + $0x178] sm:$0xff] %v558
              $region91: #{tpu_custom_call.1} parent=85 // loop_footer
                %s461 = sadd.s32 1, %s457
              $region92: #{tpu_custom_call.1} parent=85 // loop_footer_branch
                %456 = sbr.rel target = $region88
              $region93: #{tpu_custom_call.1} parent=85 // loop_exit
                _
            $region86: #{tpu_custom_call.1} parent=77 // pred_fallthru
              _
          $region78: #{tpu_custom_call.1} parent=73 // pred_fallthru
            _
          %668 = vnop
        $region74: #{tpu_custom_call.1} parent=31 // pred_fallthru
          _
      $region32: #{tpu_custom_call.1} parent=5 // pred_fallthru
        _
      %p669 = scmp.le.s32.totalorder 1, %s15
      %p670 = scmp.lt.s32.totalorder %s15, 3
      %p671 = pnand %p669, %p670
      %p672 = pneg %p671
      // Predicated region
      $region109: #{tpu_custom_call.1} parent=5 // pred_check
        _
      $region110: #{tpu_custom_call.1} parent=5 // pred_check_branch
        %674 = sbr.rel (%p671) target = $region112
      $region111: #{tpu_custom_call.1} parent=5 // pred_region
        %s675 = ssub.s32 %s15, 1
        %s676 = sand.u32 %s28, 1
        %s677 = sand.u32 %s28, 1
        %s678 = smul.addr %s677, 384
        %s679 = scalar_lea.vmem [#allocation2], %s678
        // Predicated region
        $region113: #{tpu_custom_call.1} parent=111 // pred_check
          %p680 = pneg %p41
        $region114: #{tpu_custom_call.1} parent=111 // pred_check_branch
          %682 = sbr.rel (%p680) target = $region116
        $region115: #{tpu_custom_call.1} parent=111 // pred_region
          _
        $region116: #{tpu_custom_call.1} parent=111 // pred_fallthru
          _
        %s683 = sand.u32 %s117, 1
        %s684 = sand.u32 %s117, 1
        %s685 = smul.addr %s684, 384
        %s686 = scalar_lea.vmem [#allocation3], %s685
        // Predicated region
        $region117: #{tpu_custom_call.1} parent=111 // pred_check
          %p687 = pneg %p130
        $region118: #{tpu_custom_call.1} parent=111 // pred_check_branch
          %689 = sbr.rel (%p687) target = $region120
        $region119: #{tpu_custom_call.1} parent=111 // pred_region
          _
        $region120: #{tpu_custom_call.1} parent=111 // pred_fallthru
          _
        %s690 = sand.u32 %s28, 1
        %s691 = sand.u32 %s28, 1
        %s692 = smul.addr %s691, 384
        %s693 = scalar_lea.vmem [#allocation2], %s692
        %p694 = pneg %p41
        %p695 = pneg %p38
        %p696 = pneg %p62
        %p697 = pneg %p59
        %p698 = pneg %p83
        %p699 = pneg %p80
        %p700 = pneg %p104
        %p701 = pneg %p101
        %s702 = sand.u32 %s117, 1
        %s703 = sand.u32 %s117, 1
        %s704 = smul.addr %s703, 384
        %s705 = scalar_lea.vmem [#allocation3], %s704
        %p706 = pneg %p130
        %p707 = pneg %p127
        %p708 = pneg %p151
        %p709 = pneg %p148
        %p710 = pneg %p177
        %p711 = pneg %p174
        %s712 = sand.u32 %s164, 1
        %s713 = scalar_lea.sflag [#allocation5], %s712
        %s714 = sand.u32 %s164, 1
        %s715 = smul.addr %s714, 64
        %s716 = scalar_lea.vmem [#allocation4], %s715
        %s717 = smul.u32 16, %s20
        %s718 = smul.u32 16, %s20
        %s719 = smul.u32 16, %s20
        %v721 = vld [vmem:[%s1] sm:$0xf]
        %v722 = vld [vmem:[%s1 + $0x4] sm:$0xf]
        %v723 = vld [vmem:[%s1 + $0x8] sm:$0xf]
        %v724 = vld [vmem:[%s1 + $0xc] sm:$0xf]
        %v725 = vld [vmem:[%s1 + $0x10] sm:$0xf]
        %v726 = vld [vmem:[%s1 + $0x14] sm:$0xf]
        %v727 = vld [vmem:[%s1 + $0x18] sm:$0xf]
        %v728 = vld [vmem:[%s1 + $0x1c] sm:$0xf]
        %v729 = vld [vmem:[%s1 + $0x20] sm:$0xf]
        %v730 = vld [vmem:[%s1 + $0x24] sm:$0xf]
        %v731 = vld [vmem:[%s1 + $0x28] sm:$0xf]
        %v732 = vld [vmem:[%s1 + $0x2c] sm:$0xf]
        %v733 = vld [vmem:[%s1 + $0x30] sm:$0xf]
        %v734 = vld [vmem:[%s1 + $0x34] sm:$0xf]
        %v735 = vld [vmem:[%s1 + $0x38] sm:$0xf]
        %v736 = vld [vmem:[%s1 + $0x3c] sm:$0xf]
        %v737 = vld [vmem:[%s1 + $0x40] sm:$0xf]
        %v738 = vld [vmem:[%s1 + $0x44] sm:$0xf]
        %v739 = vld [vmem:[%s1 + $0x48] sm:$0xf]
        %v740 = vld [vmem:[%s1 + $0x4c] sm:$0xf]
        %v741 = vld [vmem:[%s1 + $0x50] sm:$0xf]
        %v742 = vld [vmem:[%s1 + $0x54] sm:$0xf]
        %v743 = vld [vmem:[%s1 + $0x58] sm:$0xf]
        %v744 = vld [vmem:[%s1 + $0x5c] sm:$0xf]
        %v745 = vld [vmem:[%s1 + $0x60] sm:$0xf]
        %v746 = vld [vmem:[%s1 + $0x64] sm:$0xf]
        %v747 = vld [vmem:[%s1 + $0x68] sm:$0xf]
        %v748 = vld [vmem:[%s1 + $0x6c] sm:$0xf]
        %v749 = vld [vmem:[%s1 + $0x70] sm:$0xf]
        %v750 = vld [vmem:[%s1 + $0x74] sm:$0xf]
        %v751 = vld [vmem:[%s1 + $0x78] sm:$0xf]
        %v752 = vld [vmem:[%s1 + $0x7c] sm:$0xf]
        %v753 = vld [vmem:[%s2] sm:$0xff]
        %v754 = vld [vmem:[%s2 + $0x8] sm:$0xf]
        %v755 = vld [vmem:[%s2 + $0xc] sm:$0xff]
        %v756 = vld [vmem:[%s2 + $0x14] sm:$0xf]
        %v757 = vld [vmem:[%s2 + $0x18] sm:$0xff]
        %v758 = vld [vmem:[%s2 + $0x20] sm:$0xf]
        %v759 = vld [vmem:[%s2 + $0x24] sm:$0xff]
        %v760 = vld [vmem:[%s2 + $0x2c] sm:$0xf]
        %v793 = vunpack.c.l.b16 %v721
        %v794 = vunpack.c.l.b16 %v722
        %v795 = vunpack.c.l.b16 %v723
        %v796 = vunpack.c.l.b16 %v724
        %v797 = vunpack.c.l.b16 %v725
        %v798 = vunpack.c.l.b16 %v726
        %v799 = vunpack.c.l.b16 %v727
        %v800 = vunpack.c.l.b16 %v728
        %v801 = vunpack.c.l.b16 %v729
        %v802 = vunpack.c.l.b16 %v730
        %v803 = vunpack.c.l.b16 %v731
        %v804 = vunpack.c.l.b16 %v732
        %v805 = vunpack.c.l.b16 %v733
        %v806 = vunpack.c.l.b16 %v734
        %v807 = vunpack.c.l.b16 %v735
        %v808 = vunpack.c.l.b16 %v736
        %v809 = vunpack.c.l.b16 %v737
        %v810 = vunpack.c.l.b16 %v738
        %v811 = vunpack.c.l.b16 %v739
        %v812 = vunpack.c.l.b16 %v740
        %v813 = vunpack.c.l.b16 %v741
        %v814 = vunpack.c.l.b16 %v742
        %v815 = vunpack.c.l.b16 %v743
        %v816 = vunpack.c.l.b16 %v744
        %v817 = vunpack.c.l.b16 %v745
        %v818 = vunpack.c.l.b16 %v746
        %v819 = vunpack.c.l.b16 %v747
        %v820 = vunpack.c.l.b16 %v748
        %v821 = vunpack.c.l.b16 %v749
        %v822 = vunpack.c.l.b16 %v750
        %v823 = vunpack.c.l.b16 %v751
        %v824 = vunpack.c.l.b16 %v752
        %v825 = vpack.c.b16 %v794, %v793
        %v826 = vpack.c.b16 %v796, %v795
        %v827 = vpack.c.b16 %v798, %v797
        %v828 = vpack.c.b16 %v800, %v799
        %v829 = vpack.c.b16 %v802, %v801
        %v830 = vpack.c.b16 %v804, %v803
        %v831 = vpack.c.b16 %v806, %v805
        %v832 = vpack.c.b16 %v808, %v807
        %v833 = vpack.c.b16 %v810, %v809
        %v834 = vpack.c.b16 %v812, %v811
        %v835 = vpack.c.b16 %v814, %v813
        %v836 = vpack.c.b16 %v816, %v815
        %v837 = vpack.c.b16 %v818, %v817
        %v838 = vpack.c.b16 %v820, %v819
        %v839 = vpack.c.b16 %v822, %v821
        %v840 = vpack.c.b16 %v824, %v823
        %v849 = vunpack.c.l.b16 %v753
        %v850 = vunpack.c.h.b16 %v753
        %v851 = vunpack.c.l.b16 %v754
        %v852 = vunpack.c.l.b16 %v755
        %v853 = vunpack.c.h.b16 %v755
        %v854 = vunpack.c.l.b16 %v756
        %v855 = vunpack.c.l.b16 %v757
        %v856 = vunpack.c.h.b16 %v757
        %v857 = vunpack.c.l.b16 %v758
        %v858 = vunpack.c.l.b16 %v759
        %v859 = vunpack.c.h.b16 %v759
        %v860 = vunpack.c.l.b16 %v760
        %v861 = vpack.c.b16 %v852, %v849
        %v862 = vpack.c.b16 %v853, %v850
        %v863 = vpack.c.b16 %v854, %v851
        %v864 = vpack.c.b16 %v858, %v855
        %v865 = vpack.c.b16 %v859, %v856
        %v866 = vpack.c.b16 %v860, %v857
        %vm873 = vcmask 261120
        %v875 = vsel %vm873, %v825, 0
        %v878 = vsel %vm873, %v826, 0
        %v881 = vsel %vm873, %v827, 0
        %v884 = vsel %vm873, %v828, 0
        %v887 = vsel %vm873, %v829, 0
        %v890 = vsel %vm873, %v830, 0
        %v893 = vsel %vm873, %v831, 0
        %v896 = vsel %vm873, %v832, 0
        %v899 = vsel %vm873, %v833, 0
        %v902 = vsel %vm873, %v834, 0
        %v905 = vsel %vm873, %v835, 0
        %v908 = vsel %vm873, %v836, 0
        %v911 = vsel %vm873, %v837, 0
        %v914 = vsel %vm873, %v838, 0
        %v917 = vsel %vm873, %v839, 0
        %v920 = vsel %vm873, %v840, 0
        %922 = vmatprep.subr.bf16.mxu0 %v862
        %923 = vmatpush1.bf16.msra.mxu0 %v861
        %924 = vmatprep.subr.bf16.mxu0 %v865
        %925 = vmatpush1.bf16.msra.mxu0 %v864
        %926 = vmatprep.subr.bf16.mxu0 0
        %927 = vmatpush1.bf16.msra.mxu0 0
        %928 = vmatprep.subr.bf16.mxu0 0
        %929 = vmatpush1.bf16.msra.mxu0 0
        %930 = vmatprep.subr.bf16.mxu0 0
        %931 = vmatpush1.bf16.msra.mxu0 0
        %932 = vmatprep.subr.bf16.mxu0 0
        %933 = vmatpush1.bf16.msra.mxu0 0
        %934 = vmatprep.subr.bf16.mxu0 0
        %935 = vmatpush1.bf16.msra.mxu0 0
        %936 = vmatprep.subr.bf16.mxu0 0
        %937 = vmatpush1.bf16.msra.mxu0 0
        %938 = vmatprep.subr.bf16.mxu0 0
        %939 = vmatpush1.bf16.msra.mxu0 0
        %940 = vmatprep.subr.bf16.mxu0 0
        %941 = vmatpush1.bf16.msra.mxu0 0
        %942 = vmatprep.subr.bf16.mxu0 0
        %943 = vmatpush1.bf16.msra.mxu0 0
        %944 = vmatprep.subr.bf16.mxu0 0
        %945 = vmatpush1.bf16.msra.mxu0 0
        %946 = vmatprep.subr.bf16.mxu0 0
        %947 = vmatpush1.bf16.msra.mxu0 0
        %948 = vmatprep.subr.bf16.mxu0 0
        %949 = vmatpush1.bf16.msra.mxu0 0
        %950 = vmatprep.subr.bf16.mxu0 0
        %951 = vmatpush1.bf16.msra.mxu0 0
        %952 = vmatprep.subr.bf16.mxu0 0
        %953 = vmatpush1.bf16.msra.mxu0 0
        %954 = vmatprep.mubr.bf16.mxu0 0
        %955 = vmatmul.mubr.bf16.gmra.mrb[0].mxu0 %v875
        %v956 = vpop.f32.mrb[0].mxu0
        %v957 = vadd.f32 0.0, %v956
        %v958 = vpop.f32.mrb[0].mxu0
        %v959 = vadd.f32 0.0, %v958
        %v960 = vpop.f32.mrb[0].mxu0
        %v961 = vadd.f32 0.0, %v960
        %v962 = vpop.f32.mrb[0].mxu0
        %v963 = vadd.f32 0.0, %v962
        %964 = vmatprep.mubr.bf16.mxu0 0
        %965 = vmatmul.mubr.bf16.gmra.mrb[0].mxu0 %v878
        %v966 = vpop.f32.mrb[0].mxu0
        %v967 = vadd.f32 0.0, %v966
        %v968 = vpop.f32.mrb[0].mxu0
        %v969 = vadd.f32 0.0, %v968
        %v970 = vpop.f32.mrb[0].mxu0
        %v971 = vadd.f32 0.0, %v970
        %v972 = vpop.f32.mrb[0].mxu0
        %v973 = vadd.f32 0.0, %v972
        %974 = vmatprep.mubr.bf16.mxu0 0
        %975 = vmatmul.mubr.bf16.gmra.mrb[0].mxu0 %v881
        %v976 = vpop.f32.mrb[0].mxu0
        %v977 = vadd.f32 0.0, %v976
        %v978 = vpop.f32.mrb[0].mxu0
        %v979 = vadd.f32 0.0, %v978
        %v980 = vpop.f32.mrb[0].mxu0
        %v981 = vadd.f32 0.0, %v980
        %v982 = vpop.f32.mrb[0].mxu0
        %v983 = vadd.f32 0.0, %v982
        %984 = vmatprep.mubr.bf16.mxu0 0
        %985 = vmatmul.mubr.bf16.gmra.mrb[0].mxu0 %v884
        %v986 = vpop.f32.mrb[0].mxu0
        %v987 = vadd.f32 0.0, %v986
        %v988 = vpop.f32.mrb[0].mxu0
        %v989 = vadd.f32 0.0, %v988
        %v990 = vpop.f32.mrb[0].mxu0
        %v991 = vadd.f32 0.0, %v990
        %v992 = vpop.f32.mrb[0].mxu0
        %v993 = vadd.f32 0.0, %v992
        %994 = vmatprep.mubr.bf16.mxu0 0
        %995 = vmatmul.mubr.bf16.gmra.mrb[0].mxu0 %v887
        %v996 = vpop.f32.mrb[0].mxu0
        %v997 = vadd.f32 0.0, %v996
        %v998 = vpop.f32.mrb[0].mxu0
        %v999 = vadd.f32 0.0, %v998
        %v1000 = vpop.f32.mrb[0].mxu0
        %v1001 = vadd.f32 0.0, %v1000
        %v1002 = vpop.f32.mrb[0].mxu0
        %v1003 = vadd.f32 0.0, %v1002
        %1004 = vmatprep.mubr.bf16.mxu0 0
        %1005 = vmatmul.mubr.bf16.gmra.mrb[0].mxu0 %v890
        %v1006 = vpop.f32.mrb[0].mxu0
        %v1007 = vadd.f32 0.0, %v1006
        %v1008 = vpop.f32.mrb[0].mxu0
        %v1009 = vadd.f32 0.0, %v1008
        %v1010 = vpop.f32.mrb[0].mxu0
        %v1011 = vadd.f32 0.0, %v1010
        %v1012 = vpop.f32.mrb[0].mxu0
        %v1013 = vadd.f32 0.0, %v1012
        %1014 = vmatprep.mubr.bf16.mxu0 0
        %1015 = vmatmul.mubr.bf16.gmra.mrb[0].mxu0 %v893
        %v1016 = vpop.f32.mrb[0].mxu0
        %v1017 = vadd.f32 0.0, %v1016
        %v1018 = vpop.f32.mrb[0].mxu0
        %v1019 = vadd.f32 0.0, %v1018
        %v1020 = vpop.f32.mrb[0].mxu0
        %v1021 = vadd.f32 0.0, %v1020
        %v1022 = vpop.f32.mrb[0].mxu0
        %v1023 = vadd.f32 0.0, %v1022
        %1024 = vmatprep.mubr.bf16.mxu0 0
        %1025 = vmatmul.mubr.bf16.gmra.mrb[0].mxu0 %v896
        %v1026 = vpop.f32.mrb[0].mxu0
        %v1027 = vadd.f32 0.0, %v1026
        %v1028 = vpop.f32.mrb[0].mxu0
        %v1029 = vadd.f32 0.0, %v1028
        %v1030 = vpop.f32.mrb[0].mxu0
        %v1031 = vadd.f32 0.0, %v1030
        %v1032 = vpop.f32.mrb[0].mxu0
        %v1033 = vadd.f32 0.0, %v1032
        %1034 = vmatprep.mubr.bf16.mxu0 0
        %1035 = vmatmul.mubr.bf16.gmra.mrb[0].mxu0 %v899
        %v1036 = vpop.f32.mrb[0].mxu0
        %v1037 = vadd.f32 0.0, %v1036
        %v1038 = vpop.f32.mrb[0].mxu0
        %v1039 = vadd.f32 0.0, %v1038
        %v1040 = vpop.f32.mrb[0].mxu0
        %v1041 = vadd.f32 0.0, %v1040
        %v1042 = vpop.f32.mrb[0].mxu0
        %v1043 = vadd.f32 0.0, %v1042
        %1044 = vmatprep.mubr.bf16.mxu0 0
        %1045 = vmatmul.mubr.bf16.gmra.mrb[0].mxu0 %v902
        %v1046 = vpop.f32.mrb[0].mxu0
        %v1047 = vadd.f32 0.0, %v1046
        %v1048 = vpop.f32.mrb[0].mxu0
        %v1049 = vadd.f32 0.0, %v1048
        %v1050 = vpop.f32.mrb[0].mxu0
        %v1051 = vadd.f32 0.0, %v1050
        %v1052 = vpop.f32.mrb[0].mxu0
        %v1053 = vadd.f32 0.0, %v1052
        %1054 = vmatprep.mubr.bf16.mxu0 0
        %1055 = vmatmul.mubr.bf16.gmra.mrb[0].mxu0 %v905
        %v1056 = vpop.f32.mrb[0].mxu0
        %v1057 = vadd.f32 0.0, %v1056
        %v1058 = vpop.f32.mrb[0].mxu0
        %v1059 = vadd.f32 0.0, %v1058
        %v1060 = vpop.f32.mrb[0].mxu0
        %v1061 = vadd.f32 0.0, %v1060
        %v1062 = vpop.f32.mrb[0].mxu0
        %v1063 = vadd.f32 0.0, %v1062
        %1064 = vmatprep.mubr.bf16.mxu0 0
        %1065 = vmatmul.mubr.bf16.gmra.mrb[0].mxu0 %v908
        %v1066 = vpop.f32.mrb[0].mxu0
        %v1067 = vadd.f32 0.0, %v1066
        %v1068 = vpop.f32.mrb[0].mxu0
        %v1069 = vadd.f32 0.0, %v1068
        %v1070 = vpop.f32.mrb[0].mxu0
        %v1071 = vadd.f32 0.0, %v1070
        %v1072 = vpop.f32.mrb[0].mxu0
        %v1073 = vadd.f32 0.0, %v1072
        %1074 = vmatprep.mubr.bf16.mxu0 0
        %1075 = vmatmul.mubr.bf16.gmra.mrb[0].mxu0 %v911
        %v1076 = vpop.f32.mrb[0].mxu0
        %v1077 = vadd.f32 0.0, %v1076
        %v1078 = vpop.f32.mrb[0].mxu0
        %v1079 = vadd.f32 0.0, %v1078
        %v1080 = vpop.f32.mrb[0].mxu0
        %v1081 = vadd.f32 0.0, %v1080
        %v1082 = vpop.f32.mrb[0].mxu0
        %v1083 = vadd.f32 0.0, %v1082
        %1084 = vmatprep.mubr.bf16.mxu0 0
        %1085 = vmatmul.mubr.bf16.gmra.mrb[0].mxu0 %v914
        %v1086 = vpop.f32.mrb[0].mxu0
        %v1087 = vadd.f32 0.0, %v1086
        %v1088 = vpop.f32.mrb[0].mxu0
        %v1089 = vadd.f32 0.0, %v1088
        %v1090 = vpop.f32.mrb[0].mxu0
        %v1091 = vadd.f32 0.0, %v1090
        %v1092 = vpop.f32.mrb[0].mxu0
        %v1093 = vadd.f32 0.0, %v1092
        %1094 = vmatprep.mubr.bf16.mxu0 0
        %1095 = vmatmul.mubr.bf16.gmra.mrb[0].mxu0 %v917
        %v1096 = vpop.f32.mrb[0].mxu0
        %v1097 = vadd.f32 0.0, %v1096
        %v1098 = vpop.f32.mrb[0].mxu0
        %v1099 = vadd.f32 0.0, %v1098
        %v1100 = vpop.f32.mrb[0].mxu0
        %v1101 = vadd.f32 0.0, %v1100
        %v1102 = vpop.f32.mrb[0].mxu0
        %v1103 = vadd.f32 0.0, %v1102
        %1104 = vmatprep.mubr.bf16.mxu0 0
        %1105 = vmatmul.mubr.bf16.gmra.mrb[0].mxu0 %v920
        %v1106 = vpop.f32.mrb[0].mxu0
        %v1107 = vadd.f32 0.0, %v1106
        %v1108 = vpop.f32.mrb[0].mxu0
        %v1109 = vadd.f32 0.0, %v1108
        %v1110 = vpop.f32.mrb[0].mxu0
        %v1111 = vadd.f32 0.0, %v1110
        %v1112 = vpop.f32.mrb[0].mxu0
        %v1113 = vadd.f32 0.0, %v1112
        %1114 = vdwg.mxu0
        %1115 = vmatprep.subr.bf16.mxu0 0
        %1116 = vmatpush1.bf16.msra.mxu0 %v863
        %1117 = vmatprep.subr.bf16.mxu0 0
        %1118 = vmatpush1.bf16.msra.mxu0 %v866
        %1119 = vmatprep.subr.bf16.mxu0 0
        %1120 = vmatpush1.bf16.msra.mxu0 0
        %1121 = vmatprep.subr.bf16.mxu0 0
        %1122 = vmatpush1.bf16.msra.mxu0 0
        %1123 = vmatprep.subr.bf16.mxu0 0
        %1124 = vmatpush1.bf16.msra.mxu0 0
        %1125 = vmatprep.subr.bf16.mxu0 0
        %1126 = vmatpush1.bf16.msra.mxu0 0
        %1127 = vmatprep.subr.bf16.mxu0 0
        %1128 = vmatpush1.bf16.msra.mxu0 0
        %1129 = vmatprep.subr.bf16.mxu0 0
        %1130 = vmatpush1.bf16.msra.mxu0 0
        %1131 = vmatprep.subr.bf16.mxu0 0
        %1132 = vmatpush1.bf16.msra.mxu0 0
        %1133 = vmatprep.subr.bf16.mxu0 0
        %1134 = vmatpush1.bf16.msra.mxu0 0
        %1135 = vmatprep.subr.bf16.mxu0 0
        %1136 = vmatpush1.bf16.msra.mxu0 0
        %1137 = vmatprep.subr.bf16.mxu0 0
        %1138 = vmatpush1.bf16.msra.mxu0 0
        %1139 = vmatprep.subr.bf16.mxu0 0
        %1140 = vmatpush1.bf16.msra.mxu0 0
        %1141 = vmatprep.subr.bf16.mxu0 0
        %1142 = vmatpush1.bf16.msra.mxu0 0
        %1143 = vmatprep.subr.bf16.mxu0 0
        %1144 = vmatpush1.bf16.msra.mxu0 0
        %1145 = vmatprep.subr.bf16.mxu0 0
        %1146 = vmatpush1.bf16.msra.mxu0 0
        %1147 = vmatprep.mubr.bf16.mxu0 0
        %1148 = vmatmul.mubr.bf16.gmra.mrb[0].mxu0 %v875
        %v1149 = vpop.f32.mrb[0].mxu0
        %v1150 = vadd.f32 0.0, %v1149
        %v1151 = vpop.f32.mrb[0].mxu0
        %v1152 = vpop.f32.mrb[0].mxu0
        %v1153 = vadd.f32 0.0, %v1152
        %v1154 = vpop.f32.mrb[0].mxu0
        %1155 = vmatprep.mubr.bf16.mxu0 0
        %1156 = vmatmul.mubr.bf16.gmra.mrb[0].mxu0 %v878
        %v1157 = vpop.f32.mrb[0].mxu0
        %v1158 = vadd.f32 0.0, %v1157
        %v1159 = vpop.f32.mrb[0].mxu0
        %v1160 = vpop.f32.mrb[0].mxu0
        %v1161 = vadd.f32 0.0, %v1160
        %v1162 = vpop.f32.mrb[0].mxu0
        %1163 = vmatprep.mubr.bf16.mxu0 0
        %1164 = vmatmul.mubr.bf16.gmra.mrb[0].mxu0 %v881
        %v1165 = vpop.f32.mrb[0].mxu0
        %v1166 = vadd.f32 0.0, %v1165
        %v1167 = vpop.f32.mrb[0].mxu0
        %v1168 = vpop.f32.mrb[0].mxu0
        %v1169 = vadd.f32 0.0, %v1168
        %v1170 = vpop.f32.mrb[0].mxu0
        %1171 = vmatprep.mubr.bf16.mxu0 0
        %1172 = vmatmul.mubr.bf16.gmra.mrb[0].mxu0 %v884
        %v1173 = vpop.f32.mrb[0].mxu0
        %v1174 = vadd.f32 0.0, %v1173
        %v1175 = vpop.f32.mrb[0].mxu0
        %v1176 = vpop.f32.mrb[0].mxu0
        %v1177 = vadd.f32 0.0, %v1176
        %v1178 = vpop.f32.mrb[0].mxu0
        %1179 = vmatprep.mubr.bf16.mxu0 0
        %1180 = vmatmul.mubr.bf16.gmra.mrb[0].mxu0 %v887
        %v1181 = vpop.f32.mrb[0].mxu0
        %v1182 = vadd.f32 0.0, %v1181
        %v1183 = vpop.f32.mrb[0].mxu0
        %v1184 = vpop.f32.mrb[0].mxu0
        %v1185 = vadd.f32 0.0, %v1184
        %v1186 = vpop.f32.mrb[0].mxu0
        %1187 = vmatprep.mubr.bf16.mxu0 0
        %1188 = vmatmul.mubr.bf16.gmra.mrb[0].mxu0 %v890
        %v1189 = vpop.f32.mrb[0].mxu0
        %v1190 = vadd.f32 0.0, %v1189
        %v1191 = vpop.f32.mrb[0].mxu0
        %v1192 = vpop.f32.mrb[0].mxu0
        %v1193 = vadd.f32 0.0, %v1192
        %v1194 = vpop.f32.mrb[0].mxu0
        %1195 = vmatprep.mubr.bf16.mxu0 0
        %1196 = vmatmul.mubr.bf16.gmra.mrb[0].mxu0 %v893
        %v1197 = vpop.f32.mrb[0].mxu0
        %v1198 = vadd.f32 0.0, %v1197
        %v1199 = vpop.f32.mrb[0].mxu0
        %v1200 = vpop.f32.mrb[0].mxu0
        %v1201 = vadd.f32 0.0, %v1200
        %v1202 = vpop.f32.mrb[0].mxu0
        %1203 = vmatprep.mubr.bf16.mxu0 0
        %1204 = vmatmul.mubr.bf16.gmra.mrb[0].mxu0 %v896
        %v1205 = vpop.f32.mrb[0].mxu0
        %v1206 = vadd.f32 0.0, %v1205
        %v1207 = vpop.f32.mrb[0].mxu0
        %v1208 = vpop.f32.mrb[0].mxu0
        %v1209 = vadd.f32 0.0, %v1208
        %v1210 = vpop.f32.mrb[0].mxu0
        %1211 = vmatprep.mubr.bf16.mxu0 0
        %1212 = vmatmul.mubr.bf16.gmra.mrb[0].mxu0 %v899
        %v1213 = vpop.f32.mrb[0].mxu0
        %v1214 = vadd.f32 0.0, %v1213
        %v1215 = vpop.f32.mrb[0].mxu0
        %v1216 = vpop.f32.mrb[0].mxu0
        %v1217 = vadd.f32 0.0, %v1216
        %v1218 = vpop.f32.mrb[0].mxu0
        %1219 = vmatprep.mubr.bf16.mxu0 0
        %1220 = vmatmul.mubr.bf16.gmra.mrb[0].mxu0 %v902
        %v1221 = vpop.f32.mrb[0].mxu0
        %v1222 = vadd.f32 0.0, %v1221
        %v1223 = vpop.f32.mrb[0].mxu0
        %v1224 = vpop.f32.mrb[0].mxu0
        %v1225 = vadd.f32 0.0, %v1224
        %v1226 = vpop.f32.mrb[0].mxu0
        %1227 = vmatprep.mubr.bf16.mxu0 0
        %1228 = vmatmul.mubr.bf16.gmra.mrb[0].mxu0 %v905
        %v1229 = vpop.f32.mrb[0].mxu0
        %v1230 = vadd.f32 0.0, %v1229
        %v1231 = vpop.f32.mrb[0].mxu0
        %v1232 = vpop.f32.mrb[0].mxu0
        %v1233 = vadd.f32 0.0, %v1232
        %v1234 = vpop.f32.mrb[0].mxu0
        %1235 = vmatprep.mubr.bf16.mxu0 0
        %1236 = vmatmul.mubr.bf16.gmra.mrb[0].mxu0 %v908
        %v1237 = vpop.f32.mrb[0].mxu0
        %v1238 = vadd.f32 0.0, %v1237
        %v1239 = vpop.f32.mrb[0].mxu0
        %v1240 = vpop.f32.mrb[0].mxu0
        %v1241 = vadd.f32 0.0, %v1240
        %v1242 = vpop.f32.mrb[0].mxu0
        %1243 = vmatprep.mubr.bf16.mxu0 0
        %1244 = vmatmul.mubr.bf16.gmra.mrb[0].mxu0 %v911
        %v1245 = vpop.f32.mrb[0].mxu0
        %v1246 = vadd.f32 0.0, %v1245
        %v1247 = vpop.f32.mrb[0].mxu0
        %v1248 = vpop.f32.mrb[0].mxu0
        %v1249 = vadd.f32 0.0, %v1248
        %v1250 = vpop.f32.mrb[0].mxu0
        %1251 = vmatprep.mubr.bf16.mxu0 0
        %1252 = vmatmul.mubr.bf16.gmra.mrb[0].mxu0 %v914
        %v1253 = vpop.f32.mrb[0].mxu0
        %v1254 = vadd.f32 0.0, %v1253
        %v1255 = vpop.f32.mrb[0].mxu0
        %v1256 = vpop.f32.mrb[0].mxu0
        %v1257 = vadd.f32 0.0, %v1256
        %v1258 = vpop.f32.mrb[0].mxu0
        %1259 = vmatprep.mubr.bf16.mxu0 0
        %1260 = vmatmul.mubr.bf16.gmra.mrb[0].mxu0 %v917
        %v1261 = vpop.f32.mrb[0].mxu0
        %v1262 = vadd.f32 0.0, %v1261
        %v1263 = vpop.f32.mrb[0].mxu0
        %v1264 = vpop.f32.mrb[0].mxu0
        %v1265 = vadd.f32 0.0, %v1264
        %v1266 = vpop.f32.mrb[0].mxu0
        %1267 = vmatprep.mubr.bf16.mxu0 0
        %1268 = vmatmul.mubr.bf16.gmra.mrb[0].mxu0 %v920
        %v1269 = vpop.f32.mrb[0].mxu0
        %v1270 = vadd.f32 0.0, %v1269
        %v1271 = vpop.f32.mrb[0].mxu0
        %v1272 = vpop.f32.mrb[0].mxu0
        %v1273 = vadd.f32 0.0, %v1272
        %v1274 = vpop.f32.mrb[0].mxu0
        %1275 = vdwg.mxu0
        %v1276 = vld [vmem:[%s3] sm:$0xff]
        %v1277 = vld [vmem:[%s3 + $0x8] sm:$0xff]
        %v1278 = vld [vmem:[%s3 + $0x10] sm:$0xff]
        %v1279 = vld [vmem:[%s3 + $0x18] sm:$0xff]
        %v1280 = vld [vmem:[%s3 + $0x20] sm:$0xff]
        %v1281 = vld [vmem:[%s3 + $0x28] sm:$0xff]
        %v1282 = vld [vmem:[%s3 + $0x30] sm:$0xff]
        %v1283 = vld [vmem:[%s3 + $0x38] sm:$0xff]
        %v1284 = vld [vmem:[%s3 + $0x40] sm:$0xff]
        %v1285 = vld [vmem:[%s3 + $0x48] sm:$0xff]
        %v1286 = vld [vmem:[%s3 + $0x50] sm:$0xff]
        %v1287 = vld [vmem:[%s3 + $0x58] sm:$0xff]
        %v1288 = vld [vmem:[%s3 + $0x60] sm:$0xff]
        %v1289 = vld [vmem:[%s3 + $0x68] sm:$0xff]
        %v1290 = vld [vmem:[%s3 + $0x70] sm:$0xff]
        %v1291 = vld [vmem:[%s3 + $0x78] sm:$0xff]
        %v1292 = vld [vmem:[%s3 + $0x80] sm:$0xff]
        %v1293 = vld [vmem:[%s3 + $0x88] sm:$0xff]
        %v1294 = vld [vmem:[%s3 + $0x90] sm:$0xff]
        %v1295 = vld [vmem:[%s3 + $0x98] sm:$0xff]
        %v1296 = vld [vmem:[%s3 + $0xa0] sm:$0xff]
        %v1297 = vld [vmem:[%s3 + $0xa8] sm:$0xff]
        %v1298 = vld [vmem:[%s3 + $0xb0] sm:$0xff]
        %v1299 = vld [vmem:[%s3 + $0xb8] sm:$0xff]
        %v1300 = vld [vmem:[%s3 + $0xc0] sm:$0xff]
        %v1301 = vld [vmem:[%s3 + $0xc8] sm:$0xff]
        %v1302 = vld [vmem:[%s3 + $0xd0] sm:$0xff]
        %v1303 = vld [vmem:[%s3 + $0xd8] sm:$0xff]
        %v1304 = vld [vmem:[%s3 + $0xe0] sm:$0xff]
        %v1305 = vld [vmem:[%s3 + $0xe8] sm:$0xff]
        %v1306 = vld [vmem:[%s3 + $0xf0] sm:$0xff]
        %v1307 = vld [vmem:[%s3 + $0xf8] sm:$0xff]
        %1309 = vset.pattern.permute.xlu0 0
        %1310 = vperm.xlu0 %1309, %v1276
        %v1311 = vpop.permute.xlu0 %1310
        %1314 = vset.pattern.permute.xlu0 0
        %1315 = vperm.xlu0 %1314, %v1277
        %v1316 = vpop.permute.xlu0 %1315
        %1319 = vset.pattern.permute.xlu0 0
        %1320 = vperm.xlu0 %1319, %v1278
        %v1321 = vpop.permute.xlu0 %1320
        %1324 = vset.pattern.permute.xlu0 0
        %1325 = vperm.xlu0 %1324, %v1279
        %v1326 = vpop.permute.xlu0 %1325
        %1329 = vset.pattern.permute.xlu0 0
        %1330 = vperm.xlu0 %1329, %v1280
        %v1331 = vpop.permute.xlu0 %1330
        %1334 = vset.pattern.permute.xlu0 0
        %1335 = vperm.xlu0 %1334, %v1281
        %v1336 = vpop.permute.xlu0 %1335
        %1339 = vset.pattern.permute.xlu0 0
        %1340 = vperm.xlu0 %1339, %v1282
        %v1341 = vpop.permute.xlu0 %1340
        %1344 = vset.pattern.permute.xlu0 0
        %1345 = vperm.xlu0 %1344, %v1283
        %v1346 = vpop.permute.xlu0 %1345
        %1349 = vset.pattern.permute.xlu0 0
        %1350 = vperm.xlu0 %1349, %v1284
        %v1351 = vpop.permute.xlu0 %1350
        %1354 = vset.pattern.permute.xlu0 0
        %1355 = vperm.xlu0 %1354, %v1285
        %v1356 = vpop.permute.xlu0 %1355
        %1359 = vset.pattern.permute.xlu0 0
        %1360 = vperm.xlu0 %1359, %v1286
        %v1361 = vpop.permute.xlu0 %1360
        %1364 = vset.pattern.permute.xlu0 0
        %1365 = vperm.xlu0 %1364, %v1287
        %v1366 = vpop.permute.xlu0 %1365
        %1369 = vset.pattern.permute.xlu0 0
        %1370 = vperm.xlu0 %1369, %v1288
        %v1371 = vpop.permute.xlu0 %1370
        %1374 = vset.pattern.permute.xlu0 0
        %1375 = vperm.xlu0 %1374, %v1289
        %v1376 = vpop.permute.xlu0 %1375
        %1379 = vset.pattern.permute.xlu0 0
        %1380 = vperm.xlu0 %1379, %v1290
        %v1381 = vpop.permute.xlu0 %1380
        %1384 = vset.pattern.permute.xlu0 0
        %1385 = vperm.xlu0 %1384, %v1291
        %v1386 = vpop.permute.xlu0 %1385
        %1389 = vset.pattern.permute.xlu0 0
        %1390 = vperm.xlu0 %1389, %v1292
        %v1391 = vpop.permute.xlu0 %1390
        %1394 = vset.pattern.permute.xlu0 0
        %1395 = vperm.xlu0 %1394, %v1293
        %v1396 = vpop.permute.xlu0 %1395
        %1399 = vset.pattern.permute.xlu0 0
        %1400 = vperm.xlu0 %1399, %v1294
        %v1401 = vpop.permute.xlu0 %1400
        %1404 = vset.pattern.permute.xlu0 0
        %1405 = vperm.xlu0 %1404, %v1295
        %v1406 = vpop.permute.xlu0 %1405
        %1409 = vset.pattern.permute.xlu0 0
        %1410 = vperm.xlu0 %1409, %v1296
        %v1411 = vpop.permute.xlu0 %1410
        %1414 = vset.pattern.permute.xlu0 0
        %1415 = vperm.xlu0 %1414, %v1297
        %v1416 = vpop.permute.xlu0 %1415
        %1419 = vset.pattern.permute.xlu0 0
        %1420 = vperm.xlu0 %1419, %v1298
        %v1421 = vpop.permute.xlu0 %1420
        %1424 = vset.pattern.permute.xlu0 0
        %1425 = vperm.xlu0 %1424, %v1299
        %v1426 = vpop.permute.xlu0 %1425
        %1429 = vset.pattern.permute.xlu0 0
        %1430 = vperm.xlu0 %1429, %v1300
        %v1431 = vpop.permute.xlu0 %1430
        %1434 = vset.pattern.permute.xlu0 0
        %1435 = vperm.xlu0 %1434, %v1301
        %v1436 = vpop.permute.xlu0 %1435
        %1439 = vset.pattern.permute.xlu0 0
        %1440 = vperm.xlu0 %1439, %v1302
        %v1441 = vpop.permute.xlu0 %1440
        %1444 = vset.pattern.permute.xlu0 0
        %1445 = vperm.xlu0 %1444, %v1303
        %v1446 = vpop.permute.xlu0 %1445
        %1449 = vset.pattern.permute.xlu0 0
        %1450 = vperm.xlu0 %1449, %v1304
        %v1451 = vpop.permute.xlu0 %1450
        %1454 = vset.pattern.permute.xlu0 0
        %1455 = vperm.xlu0 %1454, %v1305
        %v1456 = vpop.permute.xlu0 %1455
        %1459 = vset.pattern.permute.xlu0 0
        %1460 = vperm.xlu0 %1459, %v1306
        %v1461 = vpop.permute.xlu0 %1460
        %1464 = vset.pattern.permute.xlu0 0
        %1465 = vperm.xlu0 %1464, %v1307
        %v1466 = vpop.permute.xlu0 %1465
        %v1468 = vmul.f32 %v957, %v1311
        %v1469 = vmul.f32 %v961, %v1316
        %v1470 = vmul.f32 %v967, %v1321
        %v1471 = vmul.f32 %v971, %v1326
        %v1472 = vmul.f32 %v977, %v1331
        %v1473 = vmul.f32 %v981, %v1336
        %v1474 = vmul.f32 %v987, %v1341
        %v1475 = vmul.f32 %v991, %v1346
        %v1476 = vmul.f32 %v997, %v1351
        %v1477 = vmul.f32 %v1001, %v1356
        %v1478 = vmul.f32 %v1007, %v1361
        %v1479 = vmul.f32 %v1011, %v1366
        %v1480 = vmul.f32 %v1017, %v1371
        %v1481 = vmul.f32 %v1021, %v1376
        %v1482 = vmul.f32 %v1027, %v1381
        %v1483 = vmul.f32 %v1031, %v1386
        %v1484 = vmul.f32 %v1037, %v1391
        %v1485 = vmul.f32 %v1041, %v1396
        %v1486 = vmul.f32 %v1047, %v1401
        %v1487 = vmul.f32 %v1051, %v1406
        %v1488 = vmul.f32 %v1057, %v1411
        %v1489 = vmul.f32 %v1061, %v1416
        %v1490 = vmul.f32 %v1067, %v1421
        %v1491 = vmul.f32 %v1071, %v1426
        %v1492 = vmul.f32 %v1077, %v1431
        %v1493 = vmul.f32 %v1081, %v1436
        %v1494 = vmul.f32 %v1087, %v1441
        %v1495 = vmul.f32 %v1091, %v1446
        %v1496 = vmul.f32 %v1097, %v1451
        %v1497 = vmul.f32 %v1101, %v1456
        %v1498 = vmul.f32 %v1107, %v1461
        %v1499 = vmul.f32 %v1111, %v1466
        %v1500 = vld [vmem:[%s679] sm:$0xff]
        %v1501 = vld [vmem:[%s679 + $0x8] sm:$0xff]
        %v1502 = vld [vmem:[%s679 + $0x10] sm:$0xff]
        %v1503 = vld [vmem:[%s679 + $0x18] sm:$0xff]
        %v1504 = vld [vmem:[%s679 + $0x20] sm:$0xff]
        %v1505 = vld [vmem:[%s679 + $0x28] sm:$0xff]
        %v1506 = vld [vmem:[%s679 + $0x30] sm:$0xff]
        %v1507 = vld [vmem:[%s679 + $0x38] sm:$0xff]
        %v1508 = vld [vmem:[%s679 + $0x40] sm:$0xff]
        %v1509 = vld [vmem:[%s679 + $0x48] sm:$0xff]
        %v1510 = vld [vmem:[%s679 + $0x50] sm:$0xff]
        %v1511 = vld [vmem:[%s679 + $0x58] sm:$0xff]
        %v1512 = vld [vmem:[%s679 + $0x60] sm:$0xff]
        %v1513 = vld [vmem:[%s679 + $0x68] sm:$0xff]
        %v1514 = vld [vmem:[%s679 + $0x70] sm:$0xff]
        %v1515 = vld [vmem:[%s679 + $0x78] sm:$0xff]
        %v1516 = vld [vmem:[%s686] sm:$0xff]
        %v1517 = vld [vmem:[%s686 + $0x8] sm:$0xff]
        %v1518 = vld [vmem:[%s686 + $0x10] sm:$0xff]
        %v1519 = vld [vmem:[%s686 + $0x18] sm:$0xff]
        %v1520 = vld [vmem:[%s686 + $0x20] sm:$0xff]
        %v1521 = vld [vmem:[%s686 + $0x28] sm:$0xff]
        %v1522 = vld [vmem:[%s686 + $0x30] sm:$0xff]
        %v1523 = vld [vmem:[%s686 + $0x38] sm:$0xff]
        %v1524 = vld [vmem:[%s686 + $0x40] sm:$0xff]
        %v1525 = vld [vmem:[%s686 + $0x48] sm:$0xff]
        %v1526 = vld [vmem:[%s686 + $0x50] sm:$0xff]
        %v1527 = vld [vmem:[%s686 + $0x58] sm:$0xff]
        %v1528 = vld [vmem:[%s686 + $0x60] sm:$0xff]
        %v1529 = vld [vmem:[%s686 + $0x68] sm:$0xff]
        %v1530 = vld [vmem:[%s686 + $0x70] sm:$0xff]
        %v1531 = vld [vmem:[%s686 + $0x78] sm:$0xff]
        %v1532 = vpack.c.bf16 %v1469, %v1468
        %v1533 = vpack.c.bf16 %v1471, %v1470
        %v1534 = vpack.c.bf16 %v1473, %v1472
        %v1535 = vpack.c.bf16 %v1475, %v1474
        %v1536 = vpack.c.bf16 %v1477, %v1476
        %v1537 = vpack.c.bf16 %v1479, %v1478
        %v1538 = vpack.c.bf16 %v1481, %v1480
        %v1539 = vpack.c.bf16 %v1483, %v1482
        %v1540 = vpack.c.bf16 %v1485, %v1484
        %v1541 = vpack.c.bf16 %v1487, %v1486
        %v1542 = vpack.c.bf16 %v1489, %v1488
        %v1543 = vpack.c.bf16 %v1491, %v1490
        %v1544 = vpack.c.bf16 %v1493, %v1492
        %v1545 = vpack.c.bf16 %v1495, %v1494
        %v1546 = vpack.c.bf16 %v1497, %v1496
        %v1547 = vpack.c.bf16 %v1499, %v1498
        %v1564 = vunpack.c.l.b16 %v1500
        %v1565 = vunpack.c.h.b16 %v1500
        %v1566 = vunpack.c.l.b16 %v1501
        %v1567 = vunpack.c.h.b16 %v1501
        %v1568 = vunpack.c.l.b16 %v1502
        %v1569 = vunpack.c.h.b16 %v1502
        %v1570 = vunpack.c.l.b16 %v1503
        %v1571 = vunpack.c.h.b16 %v1503
        %v1572 = vunpack.c.l.b16 %v1504
        %v1573 = vunpack.c.h.b16 %v1504
        %v1574 = vunpack.c.l.b16 %v1505
        %v1575 = vunpack.c.h.b16 %v1505
        %v1576 = vunpack.c.l.b16 %v1506
        %v1577 = vunpack.c.h.b16 %v1506
        %v1578 = vunpack.c.l.b16 %v1507
        %v1579 = vunpack.c.h.b16 %v1507
        %v1580 = vunpack.c.l.b16 %v1508
        %v1581 = vunpack.c.h.b16 %v1508
        %v1582 = vunpack.c.l.b16 %v1509
        %v1583 = vunpack.c.h.b16 %v1509
        %v1584 = vunpack.c.l.b16 %v1510
        %v1585 = vunpack.c.h.b16 %v1510
        %v1586 = vunpack.c.l.b16 %v1511
        %v1587 = vunpack.c.h.b16 %v1511
        %v1588 = vunpack.c.l.b16 %v1512
        %v1589 = vunpack.c.h.b16 %v1512
        %v1590 = vunpack.c.l.b16 %v1513
        %v1591 = vunpack.c.h.b16 %v1513
        %v1592 = vunpack.c.l.b16 %v1514
        %v1593 = vunpack.c.h.b16 %v1514
        %v1594 = vunpack.c.l.b16 %v1515
        %v1595 = vunpack.c.h.b16 %v1515
        %v1596 = vpack.c.b16 %v1566, %v1564
        %v1597 = vpack.c.b16 %v1567, %v1565
        %v1598 = vpack.c.b16 %v1570, %v1568
        %v1599 = vpack.c.b16 %v1571, %v1569
        %v1600 = vpack.c.b16 %v1574, %v1572
        %v1601 = vpack.c.b16 %v1575, %v1573
        %v1602 = vpack.c.b16 %v1578, %v1576
        %v1603 = vpack.c.b16 %v1579, %v1577
        %v1604 = vpack.c.b16 %v1582, %v1580
        %v1605 = vpack.c.b16 %v1583, %v1581
        %v1606 = vpack.c.b16 %v1586, %v1584
        %v1607 = vpack.c.b16 %v1587, %v1585
        %v1608 = vpack.c.b16 %v1590, %v1588
        %v1609 = vpack.c.b16 %v1591, %v1589
        %v1610 = vpack.c.b16 %v1594, %v1592
        %v1611 = vpack.c.b16 %v1595, %v1593
        %1628 = vmatprep.subr.bf16.mxu0 0
        %1629 = vmatpush1.bf16.msra.mxu0 %v1532
        %1630 = vmatprep.subr.bf16.mxu0 0
        %1631 = vmatpush1.bf16.msra.mxu0 %v1533
        %1632 = vmatprep.subr.bf16.mxu0 0
        %1633 = vmatpush1.bf16.msra.mxu0 %v1534
        %1634 = vmatprep.subr.bf16.mxu0 0
        %1635 = vmatpush1.bf16.msra.mxu0 %v1535
        %1636 = vmatprep.subr.bf16.mxu0 0
        %1637 = vmatpush1.bf16.msra.mxu0 %v1536
        %1638 = vmatprep.subr.bf16.mxu0 0
        %1639 = vmatpush1.bf16.msra.mxu0 %v1537
        %1640 = vmatprep.subr.bf16.mxu0 0
        %1641 = vmatpush1.bf16.msra.mxu0 %v1538
        %1642 = vmatprep.subr.bf16.mxu0 0
        %1643 = vmatpush1.bf16.msra.mxu0 %v1539
        %1644 = vmatprep.subr.bf16.mxu0 0
        %1645 = vmatpush1.bf16.msra.mxu0 %v1540
        %1646 = vmatprep.subr.bf16.mxu0 0
        %1647 = vmatpush1.bf16.msra.mxu0 %v1541
        %1648 = vmatprep.subr.bf16.mxu0 0
        %1649 = vmatpush1.bf16.msra.mxu0 %v1542
        %1650 = vmatprep.subr.bf16.mxu0 0
        %1651 = vmatpush1.bf16.msra.mxu0 %v1543
        %1652 = vmatprep.subr.bf16.mxu0 0
        %1653 = vmatpush1.bf16.msra.mxu0 %v1544
        %1654 = vmatprep.subr.bf16.mxu0 0
        %1655 = vmatpush1.bf16.msra.mxu0 %v1545
        %1656 = vmatprep.subr.bf16.mxu0 0
        %1657 = vmatpush1.bf16.msra.mxu0 %v1546
        %1658 = vmatprep.subr.bf16.mxu0 0
        %1659 = vmatpush1.bf16.msra.mxu0 %v1547
        %1660 = vmatprep.mubr.bf16.mxu0 %v1597
        %1661 = vmatmul.mubr.bf16.gmra.mrb[0].mxu0 %v1596
        %v1662 = vpop.f32.mrb[0].mxu0
        %v1663 = vadd.f32 0.0, %v1662
        %v1664 = vpop.f32.mrb[0].mxu0
        %v1665 = vpop.f32.mrb[0].mxu0
        %v1666 = vadd.f32 0.0, %v1665
        %v1667 = vpop.f32.mrb[0].mxu0
        %1668 = vmatprep.mubr.bf16.mxu0 %v1599
        %1669 = vmatmul.mubr.bf16.gmra.mrb[0].mxu0 %v1598
        %v1670 = vpop.f32.mrb[0].mxu0
        %v1671 = vadd.f32 0.0, %v1670
        %v1672 = vpop.f32.mrb[0].mxu0
        %v1673 = vpop.f32.mrb[0].mxu0
        %v1674 = vadd.f32 0.0, %v1673
        %v1675 = vpop.f32.mrb[0].mxu0
        %1676 = vmatprep.mubr.bf16.mxu0 %v1601
        %1677 = vmatmul.mubr.bf16.gmra.mrb[0].mxu0 %v1600
        %v1678 = vpop.f32.mrb[0].mxu0
        %v1679 = vadd.f32 0.0, %v1678
        %v1680 = vpop.f32.mrb[0].mxu0
        %v1681 = vpop.f32.mrb[0].mxu0
        %v1682 = vadd.f32 0.0, %v1681
        %v1683 = vpop.f32.mrb[0].mxu0
        %1684 = vmatprep.mubr.bf16.mxu0 %v1603
        %1685 = vmatmul.mubr.bf16.gmra.mrb[0].mxu0 %v1602
        %v1686 = vpop.f32.mrb[0].mxu0
        %v1687 = vadd.f32 0.0, %v1686
        %v1688 = vpop.f32.mrb[0].mxu0
        %v1689 = vpop.f32.mrb[0].mxu0
        %v1690 = vadd.f32 0.0, %v1689
        %v1691 = vpop.f32.mrb[0].mxu0
        %1692 = vmatprep.mubr.bf16.mxu0 %v1605
        %1693 = vmatmul.mubr.bf16.gmra.mrb[0].mxu0 %v1604
        %v1694 = vpop.f32.mrb[0].mxu0
        %v1695 = vadd.f32 0.0, %v1694
        %v1696 = vpop.f32.mrb[0].mxu0
        %v1697 = vpop.f32.mrb[0].mxu0
        %v1698 = vadd.f32 0.0, %v1697
        %v1699 = vpop.f32.mrb[0].mxu0
        %1700 = vmatprep.mubr.bf16.mxu0 %v1607
        %1701 = vmatmul.mubr.bf16.gmra.mrb[0].mxu0 %v1606
        %v1702 = vpop.f32.mrb[0].mxu0
        %v1703 = vadd.f32 0.0, %v1702
        %v1704 = vpop.f32.mrb[0].mxu0
        %v1705 = vpop.f32.mrb[0].mxu0
        %v1706 = vadd.f32 0.0, %v1705
        %v1707 = vpop.f32.mrb[0].mxu0
        %1708 = vmatprep.mubr.bf16.mxu0 %v1609
        %1709 = vmatmul.mubr.bf16.gmra.mrb[0].mxu0 %v1608
        %v1710 = vpop.f32.mrb[0].mxu0
        %v1711 = vadd.f32 0.0, %v1710
        %v1712 = vpop.f32.mrb[0].mxu0
        %v1713 = vpop.f32.mrb[0].mxu0
        %v1714 = vadd.f32 0.0, %v1713
        %v1715 = vpop.f32.mrb[0].mxu0
        %1716 = vmatprep.mubr.bf16.mxu0 %v1611
        %1717 = vmatmul.mubr.bf16.gmra.mrb[0].mxu0 %v1610
        %v1718 = vpop.f32.mrb[0].mxu0
        %v1719 = vadd.f32 0.0, %v1718
        %v1720 = vpop.f32.mrb[0].mxu0
        %v1721 = vpop.f32.mrb[0].mxu0
        %v1722 = vadd.f32 0.0, %v1721
        %v1723 = vpop.f32.mrb[0].mxu0
        %1724 = vdwg.mxu0
        %1726 = vset.pattern.permute.xlu0 0
        %1727 = vperm.xlu0 %1726, %v1516
        %v1728 = vpop.permute.xlu0 %1727
        %1731 = vset.pattern.permute.xlu0 0
        %1732 = vperm.xlu0 %1731, %v1517
        %v1733 = vpop.permute.xlu0 %1732
        %1736 = vset.pattern.permute.xlu0 0
        %1737 = vperm.xlu0 %1736, %v1518
        %v1738 = vpop.permute.xlu0 %1737
        %1741 = vset.pattern.permute.xlu0 0
        %1742 = vperm.xlu0 %1741, %v1519
        %v1743 = vpop.permute.xlu0 %1742
        %1746 = vset.pattern.permute.xlu0 0
        %1747 = vperm.xlu0 %1746, %v1520
        %v1748 = vpop.permute.xlu0 %1747
        %1751 = vset.pattern.permute.xlu0 0
        %1752 = vperm.xlu0 %1751, %v1521
        %v1753 = vpop.permute.xlu0 %1752
        %1756 = vset.pattern.permute.xlu0 0
        %1757 = vperm.xlu0 %1756, %v1522
        %v1758 = vpop.permute.xlu0 %1757
        %1761 = vset.pattern.permute.xlu0 0
        %1762 = vperm.xlu0 %1761, %v1523
        %v1763 = vpop.permute.xlu0 %1762
        %1766 = vset.pattern.permute.xlu0 0
        %1767 = vperm.xlu0 %1766, %v1524
        %v1768 = vpop.permute.xlu0 %1767
        %1771 = vset.pattern.permute.xlu0 0
        %1772 = vperm.xlu0 %1771, %v1525
        %v1773 = vpop.permute.xlu0 %1772
        %1776 = vset.pattern.permute.xlu0 0
        %1777 = vperm.xlu0 %1776, %v1526
        %v1778 = vpop.permute.xlu0 %1777
        %1781 = vset.pattern.permute.xlu0 0
        %1782 = vperm.xlu0 %1781, %v1527
        %v1783 = vpop.permute.xlu0 %1782
        %1786 = vset.pattern.permute.xlu0 0
        %1787 = vperm.xlu0 %1786, %v1528
        %v1788 = vpop.permute.xlu0 %1787
        %1791 = vset.pattern.permute.xlu0 0
        %1792 = vperm.xlu0 %1791, %v1529
        %v1793 = vpop.permute.xlu0 %1792
        %1796 = vset.pattern.permute.xlu0 0
        %1797 = vperm.xlu0 %1796, %v1530
        %v1798 = vpop.permute.xlu0 %1797
        %1801 = vset.pattern.permute.xlu0 0
        %1802 = vperm.xlu0 %1801, %v1531
        %v1803 = vpop.permute.xlu0 %1802
        %v1805 = vmul.f32 %v1728, %v1663
        %v1806 = vmul.f32 %v1733, %v1666
        %v1807 = vmul.f32 %v1738, %v1671
        %v1808 = vmul.f32 %v1743, %v1674
        %v1809 = vmul.f32 %v1748, %v1679
        %v1810 = vmul.f32 %v1753, %v1682
        %v1811 = vmul.f32 %v1758, %v1687
        %v1812 = vmul.f32 %v1763, %v1690
        %v1813 = vmul.f32 %v1768, %v1695
        %v1814 = vmul.f32 %v1773, %v1698
        %v1815 = vmul.f32 %v1778, %v1703
        %v1816 = vmul.f32 %v1783, %v1706
        %v1817 = vmul.f32 %v1788, %v1711
        %v1818 = vmul.f32 %v1793, %v1714
        %v1819 = vmul.f32 %v1798, %v1719
        %v1820 = vmul.f32 %v1803, %v1722
        %v1821 = vadd.f32 %v1805, 0.0
        %v1822 = vadd.f32 %v1806, 0.0
        %v1823 = vadd.f32 %v1807, 0.0
        %v1824 = vadd.f32 %v1808, 0.0
        %v1825 = vadd.f32 %v1809, 0.0
        %v1826 = vadd.f32 %v1810, 0.0
        %v1827 = vadd.f32 %v1811, 0.0
        %v1828 = vadd.f32 %v1812, 0.0
        %v1829 = vadd.f32 %v1813, 0.0
        %v1830 = vadd.f32 %v1814, 0.0
        %v1831 = vadd.f32 %v1815, 0.0
        %v1832 = vadd.f32 %v1816, 0.0
        %v1833 = vadd.f32 %v1817, 0.0
        %v1834 = vadd.f32 %v1818, 0.0
        %v1835 = vadd.f32 %v1819, 0.0
        %v1836 = vadd.f32 %v1820, 0.0
        %s1837 = scalar_lea.vmem %s3, 256
        %v1838 = vld [vmem:[%s1837] sm:$0xff]
        %v1839 = vld [vmem:[%s1837 + $0x8] sm:$0xff]
        %v1840 = vld [vmem:[%s1837 + $0x10] sm:$0xff]
        %v1841 = vld [vmem:[%s1837 + $0x18] sm:$0xff]
        %v1842 = vld [vmem:[%s1837 + $0x20] sm:$0xff]
        %v1843 = vld [vmem:[%s1837 + $0x28] sm:$0xff]
        %v1844 = vld [vmem:[%s1837 + $0x30] sm:$0xff]
        %v1845 = vld [vmem:[%s1837 + $0x38] sm:$0xff]
        %v1846 = vld [vmem:[%s1837 + $0x40] sm:$0xff]
        %v1847 = vld [vmem:[%s1837 + $0x48] sm:$0xff]
        %v1848 = vld [vmem:[%s1837 + $0x50] sm:$0xff]
        %v1849 = vld [vmem:[%s1837 + $0x58] sm:$0xff]
        %v1850 = vld [vmem:[%s1837 + $0x60] sm:$0xff]
        %v1851 = vld [vmem:[%s1837 + $0x68] sm:$0xff]
        %v1852 = vld [vmem:[%s1837 + $0x70] sm:$0xff]
        %v1853 = vld [vmem:[%s1837 + $0x78] sm:$0xff]
        %v1854 = vld [vmem:[%s1837 + $0x80] sm:$0xff]
        %v1855 = vld [vmem:[%s1837 + $0x88] sm:$0xff]
        %v1856 = vld [vmem:[%s1837 + $0x90] sm:$0xff]
        %v1857 = vld [vmem:[%s1837 + $0x98] sm:$0xff]
        %v1858 = vld [vmem:[%s1837 + $0xa0] sm:$0xff]
        %v1859 = vld [vmem:[%s1837 + $0xa8] sm:$0xff]
        %v1860 = vld [vmem:[%s1837 + $0xb0] sm:$0xff]
        %v1861 = vld [vmem:[%s1837 + $0xb8] sm:$0xff]
        %v1862 = vld [vmem:[%s1837 + $0xc0] sm:$0xff]
        %v1863 = vld [vmem:[%s1837 + $0xc8] sm:$0xff]
        %v1864 = vld [vmem:[%s1837 + $0xd0] sm:$0xff]
        %v1865 = vld [vmem:[%s1837 + $0xd8] sm:$0xff]
        %v1866 = vld [vmem:[%s1837 + $0xe0] sm:$0xff]
        %v1867 = vld [vmem:[%s1837 + $0xe8] sm:$0xff]
        %v1868 = vld [vmem:[%s1837 + $0xf0] sm:$0xff]
        %v1869 = vld [vmem:[%s1837 + $0xf8] sm:$0xff]
        %1871 = vset.pattern.permute.xlu0 0
        %1872 = vperm.xlu0 %1871, %v1838
        %v1873 = vpop.permute.xlu0 %1872
        %1876 = vset.pattern.permute.xlu0 0
        %1877 = vperm.xlu0 %1876, %v1839
        %v1878 = vpop.permute.xlu0 %1877
        %1881 = vset.pattern.permute.xlu0 0
        %1882 = vperm.xlu0 %1881, %v1840
        %v1883 = vpop.permute.xlu0 %1882
        %1886 = vset.pattern.permute.xlu0 0
        %1887 = vperm.xlu0 %1886, %v1841
        %v1888 = vpop.permute.xlu0 %1887
        %1891 = vset.pattern.permute.xlu0 0
        %1892 = vperm.xlu0 %1891, %v1842
        %v1893 = vpop.permute.xlu0 %1892
        %1896 = vset.pattern.permute.xlu0 0
        %1897 = vperm.xlu0 %1896, %v1843
        %v1898 = vpop.permute.xlu0 %1897
        %1901 = vset.pattern.permute.xlu0 0
        %1902 = vperm.xlu0 %1901, %v1844
        %v1903 = vpop.permute.xlu0 %1902
        %1906 = vset.pattern.permute.xlu0 0
        %1907 = vperm.xlu0 %1906, %v1845
        %v1908 = vpop.permute.xlu0 %1907
        %1911 = vset.pattern.permute.xlu0 0
        %1912 = vperm.xlu0 %1911, %v1846
        %v1913 = vpop.permute.xlu0 %1912
        %1916 = vset.pattern.permute.xlu0 0
        %1917 = vperm.xlu0 %1916, %v1847
        %v1918 = vpop.permute.xlu0 %1917
        %1921 = vset.pattern.permute.xlu0 0
        %1922 = vperm.xlu0 %1921, %v1848
        %v1923 = vpop.permute.xlu0 %1922
        %1926 = vset.pattern.permute.xlu0 0
        %1927 = vperm.xlu0 %1926, %v1849
        %v1928 = vpop.permute.xlu0 %1927
        %1931 = vset.pattern.permute.xlu0 0
        %1932 = vperm.xlu0 %1931, %v1850
        %v1933 = vpop.permute.xlu0 %1932
        %1936 = vset.pattern.permute.xlu0 0
        %1937 = vperm.xlu0 %1936, %v1851
        %v1938 = vpop.permute.xlu0 %1937
        %1941 = vset.pattern.permute.xlu0 0
        %1942 = vperm.xlu0 %1941, %v1852
        %v1943 = vpop.permute.xlu0 %1942
        %1946 = vset.pattern.permute.xlu0 0
        %1947 = vperm.xlu0 %1946, %v1853
        %v1948 = vpop.permute.xlu0 %1947
        %1951 = vset.pattern.permute.xlu0 0
        %1952 = vperm.xlu0 %1951, %v1854
        %v1953 = vpop.permute.xlu0 %1952
        %1956 = vset.pattern.permute.xlu0 0
        %1957 = vperm.xlu0 %1956, %v1855
        %v1958 = vpop.permute.xlu0 %1957
        %1961 = vset.pattern.permute.xlu0 0
        %1962 = vperm.xlu0 %1961, %v1856
        %v1963 = vpop.permute.xlu0 %1962
        %1966 = vset.pattern.permute.xlu0 0
        %1967 = vperm.xlu0 %1966, %v1857
        %v1968 = vpop.permute.xlu0 %1967
        %1971 = vset.pattern.permute.xlu0 0
        %1972 = vperm.xlu0 %1971, %v1858
        %v1973 = vpop.permute.xlu0 %1972
        %1976 = vset.pattern.permute.xlu0 0
        %1977 = vperm.xlu0 %1976, %v1859
        %v1978 = vpop.permute.xlu0 %1977
        %1981 = vset.pattern.permute.xlu0 0
        %1982 = vperm.xlu0 %1981, %v1860
        %v1983 = vpop.permute.xlu0 %1982
        %1986 = vset.pattern.permute.xlu0 0
        %1987 = vperm.xlu0 %1986, %v1861
        %v1988 = vpop.permute.xlu0 %1987
        %1991 = vset.pattern.permute.xlu0 0
        %1992 = vperm.xlu0 %1991, %v1862
        %v1993 = vpop.permute.xlu0 %1992
        %1996 = vset.pattern.permute.xlu0 0
        %1997 = vperm.xlu0 %1996, %v1863
        %v1998 = vpop.permute.xlu0 %1997
        %2001 = vset.pattern.permute.xlu0 0
        %2002 = vperm.xlu0 %2001, %v1864
        %v2003 = vpop.permute.xlu0 %2002
        %2006 = vset.pattern.permute.xlu0 0
        %2007 = vperm.xlu0 %2006, %v1865
        %v2008 = vpop.permute.xlu0 %2007
        %2011 = vset.pattern.permute.xlu0 0
        %2012 = vperm.xlu0 %2011, %v1866
        %v2013 = vpop.permute.xlu0 %2012
        %2016 = vset.pattern.permute.xlu0 0
        %2017 = vperm.xlu0 %2016, %v1867
        %v2018 = vpop.permute.xlu0 %2017
        %2021 = vset.pattern.permute.xlu0 0
        %2022 = vperm.xlu0 %2021, %v1868
        %v2023 = vpop.permute.xlu0 %2022
        %2026 = vset.pattern.permute.xlu0 0
        %2027 = vperm.xlu0 %2026, %v1869
        %v2028 = vpop.permute.xlu0 %2027
        %v2030 = vmul.f32 %v959, %v1873
        %v2031 = vmul.f32 %v963, %v1878
        %v2032 = vmul.f32 %v969, %v1883
        %v2033 = vmul.f32 %v973, %v1888
        %v2034 = vmul.f32 %v979, %v1893
        %v2035 = vmul.f32 %v983, %v1898
        %v2036 = vmul.f32 %v989, %v1903
        %v2037 = vmul.f32 %v993, %v1908
        %v2038 = vmul.f32 %v999, %v1913
        %v2039 = vmul.f32 %v1003, %v1918
        %v2040 = vmul.f32 %v1009, %v1923
        %v2041 = vmul.f32 %v1013, %v1928
        %v2042 = vmul.f32 %v1019, %v1933
        %v2043 = vmul.f32 %v1023, %v1938
        %v2044 = vmul.f32 %v1029, %v1943
        %v2045 = vmul.f32 %v1033, %v1948
        %v2046 = vmul.f32 %v1039, %v1953
        %v2047 = vmul.f32 %v1043, %v1958
        %v2048 = vmul.f32 %v1049, %v1963
        %v2049 = vmul.f32 %v1053, %v1968
        %v2050 = vmul.f32 %v1059, %v1973
        %v2051 = vmul.f32 %v1063, %v1978
        %v2052 = vmul.f32 %v1069, %v1983
        %v2053 = vmul.f32 %v1073, %v1988
        %v2054 = vmul.f32 %v1079, %v1993
        %v2055 = vmul.f32 %v1083, %v1998
        %v2056 = vmul.f32 %v1089, %v2003
        %v2057 = vmul.f32 %v1093, %v2008
        %v2058 = vmul.f32 %v1099, %v2013
        %v2059 = vmul.f32 %v1103, %v2018
        %v2060 = vmul.f32 %v1109, %v2023
        %v2061 = vmul.f32 %v1113, %v2028
        %s2062 = scalar_lea.vmem %s679, 128 [#allocation2]
        %v2063 = vld [vmem:[%s2062] sm:$0xff]
        %v2064 = vld [vmem:[%s2062 + $0x8] sm:$0xff]
        %v2065 = vld [vmem:[%s2062 + $0x10] sm:$0xff]
        %v2066 = vld [vmem:[%s2062 + $0x18] sm:$0xff]
        %v2067 = vld [vmem:[%s2062 + $0x20] sm:$0xff]
        %v2068 = vld [vmem:[%s2062 + $0x28] sm:$0xff]
        %v2069 = vld [vmem:[%s2062 + $0x30] sm:$0xff]
        %v2070 = vld [vmem:[%s2062 + $0x38] sm:$0xff]
        %v2071 = vld [vmem:[%s2062 + $0x40] sm:$0xff]
        %v2072 = vld [vmem:[%s2062 + $0x48] sm:$0xff]
        %v2073 = vld [vmem:[%s2062 + $0x50] sm:$0xff]
        %v2074 = vld [vmem:[%s2062 + $0x58] sm:$0xff]
        %v2075 = vld [vmem:[%s2062 + $0x60] sm:$0xff]
        %v2076 = vld [vmem:[%s2062 + $0x68] sm:$0xff]
        %v2077 = vld [vmem:[%s2062 + $0x70] sm:$0xff]
        %v2078 = vld [vmem:[%s2062 + $0x78] sm:$0xff]
        %s2079 = scalar_lea.vmem %s686, 128 [#allocation3]
        %v2080 = vld [vmem:[%s2079] sm:$0xff]
        %v2081 = vld [vmem:[%s2079 + $0x8] sm:$0xff]
        %v2082 = vld [vmem:[%s2079 + $0x10] sm:$0xff]
        %v2083 = vld [vmem:[%s2079 + $0x18] sm:$0xff]
        %v2084 = vld [vmem:[%s2079 + $0x20] sm:$0xff]
        %v2085 = vld [vmem:[%s2079 + $0x28] sm:$0xff]
        %v2086 = vld [vmem:[%s2079 + $0x30] sm:$0xff]
        %v2087 = vld [vmem:[%s2079 + $0x38] sm:$0xff]
        %v2088 = vld [vmem:[%s2079 + $0x40] sm:$0xff]
        %v2089 = vld [vmem:[%s2079 + $0x48] sm:$0xff]
        %v2090 = vld [vmem:[%s2079 + $0x50] sm:$0xff]
        %v2091 = vld [vmem:[%s2079 + $0x58] sm:$0xff]
        %v2092 = vld [vmem:[%s2079 + $0x60] sm:$0xff]
        %v2093 = vld [vmem:[%s2079 + $0x68] sm:$0xff]
        %v2094 = vld [vmem:[%s2079 + $0x70] sm:$0xff]
        %v2095 = vld [vmem:[%s2079 + $0x78] sm:$0xff]
        %v2096 = vpack.c.bf16 %v2031, %v2030
        %v2097 = vpack.c.bf16 %v2033, %v2032
        %v2098 = vpack.c.bf16 %v2035, %v2034
        %v2099 = vpack.c.bf16 %v2037, %v2036
        %v2100 = vpack.c.bf16 %v2039, %v2038
        %v2101 = vpack.c.bf16 %v2041, %v2040
        %v2102 = vpack.c.bf16 %v2043, %v2042
        %v2103 = vpack.c.bf16 %v2045, %v2044
        %v2104 = vpack.c.bf16 %v2047, %v2046
        %v2105 = vpack.c.bf16 %v2049, %v2048
        %v2106 = vpack.c.bf16 %v2051, %v2050
        %v2107 = vpack.c.bf16 %v2053, %v2052
        %v2108 = vpack.c.bf16 %v2055, %v2054
        %v2109 = vpack.c.bf16 %v2057, %v2056
        %v2110 = vpack.c.bf16 %v2059, %v2058
        %v2111 = vpack.c.bf16 %v2061, %v2060
        %v2128 = vunpack.c.l.b16 %v2063
        %v2129 = vunpack.c.h.b16 %v2063
        %v2130 = vunpack.c.l.b16 %v2064
        %v2131 = vunpack.c.h.b16 %v2064
        %v2132 = vunpack.c.l.b16 %v2065
        %v2133 = vunpack.c.h.b16 %v2065
        %v2134 = vunpack.c.l.b16 %v2066
        %v2135 = vunpack.c.h.b16 %v2066
        %v2136 = vunpack.c.l.b16 %v2067
        %v2137 = vunpack.c.h.b16 %v2067
        %v2138 = vunpack.c.l.b16 %v2068
        %v2139 = vunpack.c.h.b16 %v2068
        %v2140 = vunpack.c.l.b16 %v2069
        %v2141 = vunpack.c.h.b16 %v2069
        %v2142 = vunpack.c.l.b16 %v2070
        %v2143 = vunpack.c.h.b16 %v2070
        %v2144 = vunpack.c.l.b16 %v2071
        %v2145 = vunpack.c.h.b16 %v2071
        %v2146 = vunpack.c.l.b16 %v2072
        %v2147 = vunpack.c.h.b16 %v2072
        %v2148 = vunpack.c.l.b16 %v2073
        %v2149 = vunpack.c.h.b16 %v2073
        %v2150 = vunpack.c.l.b16 %v2074
        %v2151 = vunpack.c.h.b16 %v2074
        %v2152 = vunpack.c.l.b16 %v2075
        %v2153 = vunpack.c.h.b16 %v2075
        %v2154 = vunpack.c.l.b16 %v2076
        %v2155 = vunpack.c.h.b16 %v2076
        %v2156 = vunpack.c.l.b16 %v2077
        %v2157 = vunpack.c.h.b16 %v2077
        %v2158 = vunpack.c.l.b16 %v2078
        %v2159 = vunpack.c.h.b16 %v2078
        %v2160 = vpack.c.b16 %v2130, %v2128
        %v2161 = vpack.c.b16 %v2131, %v2129
        %v2162 = vpack.c.b16 %v2134, %v2132
        %v2163 = vpack.c.b16 %v2135, %v2133
        %v2164 = vpack.c.b16 %v2138, %v2136
        %v2165 = vpack.c.b16 %v2139, %v2137
        %v2166 = vpack.c.b16 %v2142, %v2140
        %v2167 = vpack.c.b16 %v2143, %v2141
        %v2168 = vpack.c.b16 %v2146, %v2144
        %v2169 = vpack.c.b16 %v2147, %v2145
        %v2170 = vpack.c.b16 %v2150, %v2148
        %v2171 = vpack.c.b16 %v2151, %v2149
        %v2172 = vpack.c.b16 %v2154, %v2152
        %v2173 = vpack.c.b16 %v2155, %v2153
        %v2174 = vpack.c.b16 %v2158, %v2156
        %v2175 = vpack.c.b16 %v2159, %v2157
        %2192 = vmatprep.subr.bf16.mxu0 0
        %2193 = vmatpush1.bf16.msra.mxu0 %v2096
        %2194 = vmatprep.subr.bf16.mxu0 0
        %2195 = vmatpush1.bf16.msra.mxu0 %v2097
        %2196 = vmatprep.subr.bf16.mxu0 0
        %2197 = vmatpush1.bf16.msra.mxu0 %v2098
        %2198 = vmatprep.subr.bf16.mxu0 0
        %2199 = vmatpush1.bf16.msra.mxu0 %v2099
        %2200 = vmatprep.subr.bf16.mxu0 0
        %2201 = vmatpush1.bf16.msra.mxu0 %v2100
        %2202 = vmatprep.subr.bf16.mxu0 0
        %2203 = vmatpush1.bf16.msra.mxu0 %v2101
        %2204 = vmatprep.subr.bf16.mxu0 0
        %2205 = vmatpush1.bf16.msra.mxu0 %v2102
        %2206 = vmatprep.subr.bf16.mxu0 0
        %2207 = vmatpush1.bf16.msra.mxu0 %v2103
        %2208 = vmatprep.subr.bf16.mxu0 0
        %2209 = vmatpush1.bf16.msra.mxu0 %v2104
        %2210 = vmatprep.subr.bf16.mxu0 0
        %2211 = vmatpush1.bf16.msra.mxu0 %v2105
        %2212 = vmatprep.subr.bf16.mxu0 0
        %2213 = vmatpush1.bf16.msra.mxu0 %v2106
        %2214 = vmatprep.subr.bf16.mxu0 0
        %2215 = vmatpush1.bf16.msra.mxu0 %v2107
        %2216 = vmatprep.subr.bf16.mxu0 0
        %2217 = vmatpush1.bf16.msra.mxu0 %v2108
        %2218 = vmatprep.subr.bf16.mxu0 0
        %2219 = vmatpush1.bf16.msra.mxu0 %v2109
        %2220 = vmatprep.subr.bf16.mxu0 0
        %2221 = vmatpush1.bf16.msra.mxu0 %v2110
        %2222 = vmatprep.subr.bf16.mxu0 0
        %2223 = vmatpush1.bf16.msra.mxu0 %v2111
        %2224 = vmatprep.mubr.bf16.mxu0 %v2161
        %2225 = vmatmul.mubr.bf16.gmra.mrb[0].mxu0 %v2160
        %v2226 = vpop.f32.mrb[0].mxu0
        %v2227 = vadd.f32 0.0, %v2226
        %v2228 = vpop.f32.mrb[0].mxu0
        %v2229 = vpop.f32.mrb[0].mxu0
        %v2230 = vadd.f32 0.0, %v2229
        %v2231 = vpop.f32.mrb[0].mxu0
        %2232 = vmatprep.mubr.bf16.mxu0 %v2163
        %2233 = vmatmul.mubr.bf16.gmra.mrb[0].mxu0 %v2162
        %v2234 = vpop.f32.mrb[0].mxu0
        %v2235 = vadd.f32 0.0, %v2234
        %v2236 = vpop.f32.mrb[0].mxu0
        %v2237 = vpop.f32.mrb[0].mxu0
        %v2238 = vadd.f32 0.0, %v2237
        %v2239 = vpop.f32.mrb[0].mxu0
        %2240 = vmatprep.mubr.bf16.mxu0 %v2165
        %2241 = vmatmul.mubr.bf16.gmra.mrb[0].mxu0 %v2164
        %v2242 = vpop.f32.mrb[0].mxu0
        %v2243 = vadd.f32 0.0, %v2242
        %v2244 = vpop.f32.mrb[0].mxu0
        %v2245 = vpop.f32.mrb[0].mxu0
        %v2246 = vadd.f32 0.0, %v2245
        %v2247 = vpop.f32.mrb[0].mxu0
        %2248 = vmatprep.mubr.bf16.mxu0 %v2167
        %2249 = vmatmul.mubr.bf16.gmra.mrb[0].mxu0 %v2166
        %v2250 = vpop.f32.mrb[0].mxu0
        %v2251 = vadd.f32 0.0, %v2250
        %v2252 = vpop.f32.mrb[0].mxu0
        %v2253 = vpop.f32.mrb[0].mxu0
        %v2254 = vadd.f32 0.0, %v2253
        %v2255 = vpop.f32.mrb[0].mxu0
        %2256 = vmatprep.mubr.bf16.mxu0 %v2169
        %2257 = vmatmul.mubr.bf16.gmra.mrb[0].mxu0 %v2168
        %v2258 = vpop.f32.mrb[0].mxu0
        %v2259 = vadd.f32 0.0, %v2258
        %v2260 = vpop.f32.mrb[0].mxu0
        %v2261 = vpop.f32.mrb[0].mxu0
        %v2262 = vadd.f32 0.0, %v2261
        %v2263 = vpop.f32.mrb[0].mxu0
        %2264 = vmatprep.mubr.bf16.mxu0 %v2171
        %2265 = vmatmul.mubr.bf16.gmra.mrb[0].mxu0 %v2170
        %v2266 = vpop.f32.mrb[0].mxu0
        %v2267 = vadd.f32 0.0, %v2266
        %v2268 = vpop.f32.mrb[0].mxu0
        %v2269 = vpop.f32.mrb[0].mxu0
        %v2270 = vadd.f32 0.0, %v2269
        %v2271 = vpop.f32.mrb[0].mxu0
        %2272 = vmatprep.mubr.bf16.mxu0 %v2173
        %2273 = vmatmul.mubr.bf16.gmra.mrb[0].mxu0 %v2172
        %v2274 = vpop.f32.mrb[0].mxu0
        %v2275 = vadd.f32 0.0, %v2274
        %v2276 = vpop.f32.mrb[0].mxu0
        %v2277 = vpop.f32.mrb[0].mxu0
        %v2278 = vadd.f32 0.0, %v2277
        %v2279 = vpop.f32.mrb[0].mxu0
        %2280 = vmatprep.mubr.bf16.mxu0 %v2175
        %2281 = vmatmul.mubr.bf16.gmra.mrb[0].mxu0 %v2174
        %v2282 = vpop.f32.mrb[0].mxu0
        %v2283 = vadd.f32 0.0, %v2282
        %v2284 = vpop.f32.mrb[0].mxu0
        %v2285 = vpop.f32.mrb[0].mxu0
        %v2286 = vadd.f32 0.0, %v2285
        %v2287 = vpop.f32.mrb[0].mxu0
        %2288 = vdwg.mxu0
        %2290 = vset.pattern.permute.xlu0 0
        %2291 = vperm.xlu0 %2290, %v2080
        %v2292 = vpop.permute.xlu0 %2291
        %2295 = vset.pattern.permute.xlu0 0
        %2296 = vperm.xlu0 %2295, %v2081
        %v2297 = vpop.permute.xlu0 %2296
        %2300 = vset.pattern.permute.xlu0 0
        %2301 = vperm.xlu0 %2300, %v2082
        %v2302 = vpop.permute.xlu0 %2301
        %2305 = vset.pattern.permute.xlu0 0
        %2306 = vperm.xlu0 %2305, %v2083
        %v2307 = vpop.permute.xlu0 %2306
        %2310 = vset.pattern.permute.xlu0 0
        %2311 = vperm.xlu0 %2310, %v2084
        %v2312 = vpop.permute.xlu0 %2311
        %2315 = vset.pattern.permute.xlu0 0
        %2316 = vperm.xlu0 %2315, %v2085
        %v2317 = vpop.permute.xlu0 %2316
        %2320 = vset.pattern.permute.xlu0 0
        %2321 = vperm.xlu0 %2320, %v2086
        %v2322 = vpop.permute.xlu0 %2321
        %2325 = vset.pattern.permute.xlu0 0
        %2326 = vperm.xlu0 %2325, %v2087
        %v2327 = vpop.permute.xlu0 %2326
        %2330 = vset.pattern.permute.xlu0 0
        %2331 = vperm.xlu0 %2330, %v2088
        %v2332 = vpop.permute.xlu0 %2331
        %2335 = vset.pattern.permute.xlu0 0
        %2336 = vperm.xlu0 %2335, %v2089
        %v2337 = vpop.permute.xlu0 %2336
        %2340 = vset.pattern.permute.xlu0 0
        %2341 = vperm.xlu0 %2340, %v2090
        %v2342 = vpop.permute.xlu0 %2341
        %2345 = vset.pattern.permute.xlu0 0
        %2346 = vperm.xlu0 %2345, %v2091
        %v2347 = vpop.permute.xlu0 %2346
        %2350 = vset.pattern.permute.xlu0 0
        %2351 = vperm.xlu0 %2350, %v2092
        %v2352 = vpop.permute.xlu0 %2351
        %2355 = vset.pattern.permute.xlu0 0
        %2356 = vperm.xlu0 %2355, %v2093
        %v2357 = vpop.permute.xlu0 %2356
        %2360 = vset.pattern.permute.xlu0 0
        %2361 = vperm.xlu0 %2360, %v2094
        %v2362 = vpop.permute.xlu0 %2361
        %2365 = vset.pattern.permute.xlu0 0
        %2366 = vperm.xlu0 %2365, %v2095
        %v2367 = vpop.permute.xlu0 %2366
        %v2369 = vmul.f32 %v2292, %v2227
        %v2370 = vmul.f32 %v2297, %v2230
        %v2371 = vmul.f32 %v2302, %v2235
        %v2372 = vmul.f32 %v2307, %v2238
        %v2373 = vmul.f32 %v2312, %v2243
        %v2374 = vmul.f32 %v2317, %v2246
        %v2375 = vmul.f32 %v2322, %v2251
        %v2376 = vmul.f32 %v2327, %v2254
        %v2377 = vmul.f32 %v2332, %v2259
        %v2378 = vmul.f32 %v2337, %v2262
        %v2379 = vmul.f32 %v2342, %v2267
        %v2380 = vmul.f32 %v2347, %v2270
        %v2381 = vmul.f32 %v2352, %v2275
        %v2382 = vmul.f32 %v2357, %v2278
        %v2383 = vmul.f32 %v2362, %v2283
        %v2384 = vmul.f32 %v2367, %v2286
        %v2385 = vadd.f32 %v1821, %v2369
        %v2386 = vadd.f32 %v1822, %v2370
        %v2387 = vadd.f32 %v1823, %v2371
        %v2388 = vadd.f32 %v1824, %v2372
        %v2389 = vadd.f32 %v1825, %v2373
        %v2390 = vadd.f32 %v1826, %v2374
        %v2391 = vadd.f32 %v1827, %v2375
        %v2392 = vadd.f32 %v1828, %v2376
        %v2393 = vadd.f32 %v1829, %v2377
        %v2394 = vadd.f32 %v1830, %v2378
        %v2395 = vadd.f32 %v1831, %v2379
        %v2396 = vadd.f32 %v1832, %v2380
        %v2397 = vadd.f32 %v1833, %v2381
        %v2398 = vadd.f32 %v1834, %v2382
        %v2399 = vadd.f32 %v1835, %v2383
        %v2400 = vadd.f32 %v1836, %v2384
        %s2401 = scalar_lea.vmem %s3, 512
        %v2402 = vld [vmem:[%s2401] sm:$0xff]
        %v2403 = vld [vmem:[%s2401 + $0x8] sm:$0xff]
        %v2404 = vld [vmem:[%s2401 + $0x10] sm:$0xff]
        %v2405 = vld [vmem:[%s2401 + $0x18] sm:$0xff]
        %v2406 = vld [vmem:[%s2401 + $0x20] sm:$0xff]
        %v2407 = vld [vmem:[%s2401 + $0x28] sm:$0xff]
        %v2408 = vld [vmem:[%s2401 + $0x30] sm:$0xff]
        %v2409 = vld [vmem:[%s2401 + $0x38] sm:$0xff]
        %v2410 = vld [vmem:[%s2401 + $0x40] sm:$0xff]
        %v2411 = vld [vmem:[%s2401 + $0x48] sm:$0xff]
        %v2412 = vld [vmem:[%s2401 + $0x50] sm:$0xff]
        %v2413 = vld [vmem:[%s2401 + $0x58] sm:$0xff]
        %v2414 = vld [vmem:[%s2401 + $0x60] sm:$0xff]
        %v2415 = vld [vmem:[%s2401 + $0x68] sm:$0xff]
        %v2416 = vld [vmem:[%s2401 + $0x70] sm:$0xff]
        %v2417 = vld [vmem:[%s2401 + $0x78] sm:$0xff]
        %v2418 = vld [vmem:[%s2401 + $0x80] sm:$0xff]
        %v2419 = vld [vmem:[%s2401 + $0x88] sm:$0xff]
        %v2420 = vld [vmem:[%s2401 + $0x90] sm:$0xff]
        %v2421 = vld [vmem:[%s2401 + $0x98] sm:$0xff]
        %v2422 = vld [vmem:[%s2401 + $0xa0] sm:$0xff]
        %v2423 = vld [vmem:[%s2401 + $0xa8] sm:$0xff]
        %v2424 = vld [vmem:[%s2401 + $0xb0] sm:$0xff]
        %v2425 = vld [vmem:[%s2401 + $0xb8] sm:$0xff]
        %v2426 = vld [vmem:[%s2401 + $0xc0] sm:$0xff]
        %v2427 = vld [vmem:[%s2401 + $0xc8] sm:$0xff]
        %v2428 = vld [vmem:[%s2401 + $0xd0] sm:$0xff]
        %v2429 = vld [vmem:[%s2401 + $0xd8] sm:$0xff]
        %v2430 = vld [vmem:[%s2401 + $0xe0] sm:$0xff]
        %v2431 = vld [vmem:[%s2401 + $0xe8] sm:$0xff]
        %v2432 = vld [vmem:[%s2401 + $0xf0] sm:$0xff]
        %v2433 = vld [vmem:[%s2401 + $0xf8] sm:$0xff]
        %2435 = vset.pattern.permute.xlu0 0
        %2436 = vperm.xlu0 %2435, %v2402
        %v2437 = vpop.permute.xlu0 %2436
        %2440 = vset.pattern.permute.xlu0 0
        %2441 = vperm.xlu0 %2440, %v2403
        %v2442 = vpop.permute.xlu0 %2441
        %2445 = vset.pattern.permute.xlu0 0
        %2446 = vperm.xlu0 %2445, %v2404
        %v2447 = vpop.permute.xlu0 %2446
        %2450 = vset.pattern.permute.xlu0 0
        %2451 = vperm.xlu0 %2450, %v2405
        %v2452 = vpop.permute.xlu0 %2451
        %2455 = vset.pattern.permute.xlu0 0
        %2456 = vperm.xlu0 %2455, %v2406
        %v2457 = vpop.permute.xlu0 %2456
        %2460 = vset.pattern.permute.xlu0 0
        %2461 = vperm.xlu0 %2460, %v2407
        %v2462 = vpop.permute.xlu0 %2461
        %2465 = vset.pattern.permute.xlu0 0
        %2466 = vperm.xlu0 %2465, %v2408
        %v2467 = vpop.permute.xlu0 %2466
        %2470 = vset.pattern.permute.xlu0 0
        %2471 = vperm.xlu0 %2470, %v2409
        %v2472 = vpop.permute.xlu0 %2471
        %2475 = vset.pattern.permute.xlu0 0
        %2476 = vperm.xlu0 %2475, %v2410
        %v2477 = vpop.permute.xlu0 %2476
        %2480 = vset.pattern.permute.xlu0 0
        %2481 = vperm.xlu0 %2480, %v2411
        %v2482 = vpop.permute.xlu0 %2481
        %2485 = vset.pattern.permute.xlu0 0
        %2486 = vperm.xlu0 %2485, %v2412
        %v2487 = vpop.permute.xlu0 %2486
        %2490 = vset.pattern.permute.xlu0 0
        %2491 = vperm.xlu0 %2490, %v2413
        %v2492 = vpop.permute.xlu0 %2491
        %2495 = vset.pattern.permute.xlu0 0
        %2496 = vperm.xlu0 %2495, %v2414
        %v2497 = vpop.permute.xlu0 %2496
        %2500 = vset.pattern.permute.xlu0 0
        %2501 = vperm.xlu0 %2500, %v2415
        %v2502 = vpop.permute.xlu0 %2501
        %2505 = vset.pattern.permute.xlu0 0
        %2506 = vperm.xlu0 %2505, %v2416
        %v2507 = vpop.permute.xlu0 %2506
        %2510 = vset.pattern.permute.xlu0 0
        %2511 = vperm.xlu0 %2510, %v2417
        %v2512 = vpop.permute.xlu0 %2511
        %2515 = vset.pattern.permute.xlu0 0
        %2516 = vperm.xlu0 %2515, %v2418
        %v2517 = vpop.permute.xlu0 %2516
        %2520 = vset.pattern.permute.xlu0 0
        %2521 = vperm.xlu0 %2520, %v2419
        %v2522 = vpop.permute.xlu0 %2521
        %2525 = vset.pattern.permute.xlu0 0
        %2526 = vperm.xlu0 %2525, %v2420
        %v2527 = vpop.permute.xlu0 %2526
        %2530 = vset.pattern.permute.xlu0 0
        %2531 = vperm.xlu0 %2530, %v2421
        %v2532 = vpop.permute.xlu0 %2531
        %2535 = vset.pattern.permute.xlu0 0
        %2536 = vperm.xlu0 %2535, %v2422
        %v2537 = vpop.permute.xlu0 %2536
        %2540 = vset.pattern.permute.xlu0 0
        %2541 = vperm.xlu0 %2540, %v2423
        %v2542 = vpop.permute.xlu0 %2541
        %2545 = vset.pattern.permute.xlu0 0
        %2546 = vperm.xlu0 %2545, %v2424
        %v2547 = vpop.permute.xlu0 %2546
        %2550 = vset.pattern.permute.xlu0 0
        %2551 = vperm.xlu0 %2550, %v2425
        %v2552 = vpop.permute.xlu0 %2551
        %2555 = vset.pattern.permute.xlu0 0
        %2556 = vperm.xlu0 %2555, %v2426
        %v2557 = vpop.permute.xlu0 %2556
        %2560 = vset.pattern.permute.xlu0 0
        %2561 = vperm.xlu0 %2560, %v2427
        %v2562 = vpop.permute.xlu0 %2561
        %2565 = vset.pattern.permute.xlu0 0
        %2566 = vperm.xlu0 %2565, %v2428
        %v2567 = vpop.permute.xlu0 %2566
        %2570 = vset.pattern.permute.xlu0 0
        %2571 = vperm.xlu0 %2570, %v2429
        %v2572 = vpop.permute.xlu0 %2571
        %2575 = vset.pattern.permute.xlu0 0
        %2576 = vperm.xlu0 %2575, %v2430
        %v2577 = vpop.permute.xlu0 %2576
        %2580 = vset.pattern.permute.xlu0 0
        %2581 = vperm.xlu0 %2580, %v2431
        %v2582 = vpop.permute.xlu0 %2581
        %2585 = vset.pattern.permute.xlu0 0
        %2586 = vperm.xlu0 %2585, %v2432
        %v2587 = vpop.permute.xlu0 %2586
        %2590 = vset.pattern.permute.xlu0 0
        %2591 = vperm.xlu0 %2590, %v2433
        %v2592 = vpop.permute.xlu0 %2591
        %v2594 = vmul.f32 %v1150, %v2437
        %v2595 = vmul.f32 %v1153, %v2442
        %v2596 = vmul.f32 %v1158, %v2447
        %v2597 = vmul.f32 %v1161, %v2452
        %v2598 = vmul.f32 %v1166, %v2457
        %v2599 = vmul.f32 %v1169, %v2462
        %v2600 = vmul.f32 %v1174, %v2467
        %v2601 = vmul.f32 %v1177, %v2472
        %v2602 = vmul.f32 %v1182, %v2477
        %v2603 = vmul.f32 %v1185, %v2482
        %v2604 = vmul.f32 %v1190, %v2487
        %v2605 = vmul.f32 %v1193, %v2492
        %v2606 = vmul.f32 %v1198, %v2497
        %v2607 = vmul.f32 %v1201, %v2502
        %v2608 = vmul.f32 %v1206, %v2507
        %v2609 = vmul.f32 %v1209, %v2512
        %v2610 = vmul.f32 %v1214, %v2517
        %v2611 = vmul.f32 %v1217, %v2522
        %v2612 = vmul.f32 %v1222, %v2527
        %v2613 = vmul.f32 %v1225, %v2532
        %v2614 = vmul.f32 %v1230, %v2537
        %v2615 = vmul.f32 %v1233, %v2542
        %v2616 = vmul.f32 %v1238, %v2547
        %v2617 = vmul.f32 %v1241, %v2552
        %v2618 = vmul.f32 %v1246, %v2557
        %v2619 = vmul.f32 %v1249, %v2562
        %v2620 = vmul.f32 %v1254, %v2567
        %v2621 = vmul.f32 %v1257, %v2572
        %v2622 = vmul.f32 %v1262, %v2577
        %v2623 = vmul.f32 %v1265, %v2582
        %v2624 = vmul.f32 %v1270, %v2587
        %v2625 = vmul.f32 %v1273, %v2592
        %s2626 = scalar_lea.vmem %s679, 256 [#allocation2]
        %v2627 = vld [vmem:[%s2626] sm:$0xff]
        %v2628 = vld [vmem:[%s2626 + $0x8] sm:$0xff]
        %v2629 = vld [vmem:[%s2626 + $0x10] sm:$0xff]
        %v2630 = vld [vmem:[%s2626 + $0x18] sm:$0xff]
        %v2631 = vld [vmem:[%s2626 + $0x20] sm:$0xff]
        %v2632 = vld [vmem:[%s2626 + $0x28] sm:$0xff]
        %v2633 = vld [vmem:[%s2626 + $0x30] sm:$0xff]
        %v2634 = vld [vmem:[%s2626 + $0x38] sm:$0xff]
        %v2635 = vld [vmem:[%s2626 + $0x40] sm:$0xff]
        %v2636 = vld [vmem:[%s2626 + $0x48] sm:$0xff]
        %v2637 = vld [vmem:[%s2626 + $0x50] sm:$0xff]
        %v2638 = vld [vmem:[%s2626 + $0x58] sm:$0xff]
        %v2639 = vld [vmem:[%s2626 + $0x60] sm:$0xff]
        %v2640 = vld [vmem:[%s2626 + $0x68] sm:$0xff]
        %v2641 = vld [vmem:[%s2626 + $0x70] sm:$0xff]
        %v2642 = vld [vmem:[%s2626 + $0x78] sm:$0xff]
        %s2643 = scalar_lea.vmem %s686, 256 [#allocation3]
        %v2644 = vld [vmem:[%s2643] sm:$0xff]
        %v2645 = vld [vmem:[%s2643 + $0x8] sm:$0xff]
        %v2646 = vld [vmem:[%s2643 + $0x10] sm:$0xff]
        %v2647 = vld [vmem:[%s2643 + $0x18] sm:$0xff]
        %v2648 = vld [vmem:[%s2643 + $0x20] sm:$0xff]
        %v2649 = vld [vmem:[%s2643 + $0x28] sm:$0xff]
        %v2650 = vld [vmem:[%s2643 + $0x30] sm:$0xff]
        %v2651 = vld [vmem:[%s2643 + $0x38] sm:$0xff]
        %v2652 = vld [vmem:[%s2643 + $0x40] sm:$0xff]
        %v2653 = vld [vmem:[%s2643 + $0x48] sm:$0xff]
        %v2654 = vld [vmem:[%s2643 + $0x50] sm:$0xff]
        %v2655 = vld [vmem:[%s2643 + $0x58] sm:$0xff]
        %v2656 = vld [vmem:[%s2643 + $0x60] sm:$0xff]
        %v2657 = vld [vmem:[%s2643 + $0x68] sm:$0xff]
        %v2658 = vld [vmem:[%s2643 + $0x70] sm:$0xff]
        %v2659 = vld [vmem:[%s2643 + $0x78] sm:$0xff]
        %v2660 = vpack.c.bf16 %v2595, %v2594
        %v2661 = vpack.c.bf16 %v2597, %v2596
        %v2662 = vpack.c.bf16 %v2599, %v2598
        %v2663 = vpack.c.bf16 %v2601, %v2600
        %v2664 = vpack.c.bf16 %v2603, %v2602
        %v2665 = vpack.c.bf16 %v2605, %v2604
        %v2666 = vpack.c.bf16 %v2607, %v2606
        %v2667 = vpack.c.bf16 %v2609, %v2608
        %v2668 = vpack.c.bf16 %v2611, %v2610
        %v2669 = vpack.c.bf16 %v2613, %v2612
        %v2670 = vpack.c.bf16 %v2615, %v2614
        %v2671 = vpack.c.bf16 %v2617, %v2616
        %v2672 = vpack.c.bf16 %v2619, %v2618
        %v2673 = vpack.c.bf16 %v2621, %v2620
        %v2674 = vpack.c.bf16 %v2623, %v2622
        %v2675 = vpack.c.bf16 %v2625, %v2624
        %v2692 = vunpack.c.l.b16 %v2627
        %v2693 = vunpack.c.h.b16 %v2627
        %v2694 = vunpack.c.l.b16 %v2628
        %v2695 = vunpack.c.h.b16 %v2628
        %v2696 = vunpack.c.l.b16 %v2629
        %v2697 = vunpack.c.h.b16 %v2629
        %v2698 = vunpack.c.l.b16 %v2630
        %v2699 = vunpack.c.h.b16 %v2630
        %v2700 = vunpack.c.l.b16 %v2631
        %v2701 = vunpack.c.h.b16 %v2631
        %v2702 = vunpack.c.l.b16 %v2632
        %v2703 = vunpack.c.h.b16 %v2632
        %v2704 = vunpack.c.l.b16 %v2633
        %v2705 = vunpack.c.h.b16 %v2633
        %v2706 = vunpack.c.l.b16 %v2634
        %v2707 = vunpack.c.h.b16 %v2634
        %v2708 = vunpack.c.l.b16 %v2635
        %v2709 = vunpack.c.h.b16 %v2635
        %v2710 = vunpack.c.l.b16 %v2636
        %v2711 = vunpack.c.h.b16 %v2636
        %v2712 = vunpack.c.l.b16 %v2637
        %v2713 = vunpack.c.h.b16 %v2637
        %v2714 = vunpack.c.l.b16 %v2638
        %v2715 = vunpack.c.h.b16 %v2638
        %v2716 = vunpack.c.l.b16 %v2639
        %v2717 = vunpack.c.h.b16 %v2639
        %v2718 = vunpack.c.l.b16 %v2640
        %v2719 = vunpack.c.h.b16 %v2640
        %v2720 = vunpack.c.l.b16 %v2641
        %v2721 = vunpack.c.h.b16 %v2641
        %v2722 = vunpack.c.l.b16 %v2642
        %v2723 = vunpack.c.h.b16 %v2642
        %v2724 = vpack.c.b16 %v2694, %v2692
        %v2725 = vpack.c.b16 %v2695, %v2693
        %v2726 = vpack.c.b16 %v2698, %v2696
        %v2727 = vpack.c.b16 %v2699, %v2697
        %v2728 = vpack.c.b16 %v2702, %v2700
        %v2729 = vpack.c.b16 %v2703, %v2701
        %v2730 = vpack.c.b16 %v2706, %v2704
        %v2731 = vpack.c.b16 %v2707, %v2705
        %v2732 = vpack.c.b16 %v2710, %v2708
        %v2733 = vpack.c.b16 %v2711, %v2709
        %v2734 = vpack.c.b16 %v2714, %v2712
        %v2735 = vpack.c.b16 %v2715, %v2713
        %v2736 = vpack.c.b16 %v2718, %v2716
        %v2737 = vpack.c.b16 %v2719, %v2717
        %v2738 = vpack.c.b16 %v2722, %v2720
        %v2739 = vpack.c.b16 %v2723, %v2721
        %2756 = vmatprep.subr.bf16.mxu0 0
        %2757 = vmatpush1.bf16.msra.mxu0 %v2660
        %2758 = vmatprep.subr.bf16.mxu0 0
        %2759 = vmatpush1.bf16.msra.mxu0 %v2661
        %2760 = vmatprep.subr.bf16.mxu0 0
        %2761 = vmatpush1.bf16.msra.mxu0 %v2662
        %2762 = vmatprep.subr.bf16.mxu0 0
        %2763 = vmatpush1.bf16.msra.mxu0 %v2663
        %2764 = vmatprep.subr.bf16.mxu0 0
        %2765 = vmatpush1.bf16.msra.mxu0 %v2664
        %2766 = vmatprep.subr.bf16.mxu0 0
        %2767 = vmatpush1.bf16.msra.mxu0 %v2665
        %2768 = vmatprep.subr.bf16.mxu0 0
        %2769 = vmatpush1.bf16.msra.mxu0 %v2666
        %2770 = vmatprep.subr.bf16.mxu0 0
        %2771 = vmatpush1.bf16.msra.mxu0 %v2667
        %2772 = vmatprep.subr.bf16.mxu0 0
        %2773 = vmatpush1.bf16.msra.mxu0 %v2668
        %2774 = vmatprep.subr.bf16.mxu0 0
        %2775 = vmatpush1.bf16.msra.mxu0 %v2669
        %2776 = vmatprep.subr.bf16.mxu0 0
        %2777 = vmatpush1.bf16.msra.mxu0 %v2670
        %2778 = vmatprep.subr.bf16.mxu0 0
        %2779 = vmatpush1.bf16.msra.mxu0 %v2671
        %2780 = vmatprep.subr.bf16.mxu0 0
        %2781 = vmatpush1.bf16.msra.mxu0 %v2672
        %2782 = vmatprep.subr.bf16.mxu0 0
        %2783 = vmatpush1.bf16.msra.mxu0 %v2673
        %2784 = vmatprep.subr.bf16.mxu0 0
        %2785 = vmatpush1.bf16.msra.mxu0 %v2674
        %2786 = vmatprep.subr.bf16.mxu0 0
        %2787 = vmatpush1.bf16.msra.mxu0 %v2675
        %2788 = vmatprep.mubr.bf16.mxu0 %v2725
        %2789 = vmatmul.mubr.bf16.gmra.mrb[0].mxu0 %v2724
        %v2790 = vpop.f32.mrb[0].mxu0
        %v2791 = vadd.f32 0.0, %v2790
        %v2792 = vpop.f32.mrb[0].mxu0
        %v2793 = vpop.f32.mrb[0].mxu0
        %v2794 = vadd.f32 0.0, %v2793
        %v2795 = vpop.f32.mrb[0].mxu0
        %2796 = vmatprep.mubr.bf16.mxu0 %v2727
        %2797 = vmatmul.mubr.bf16.gmra.mrb[0].mxu0 %v2726
        %v2798 = vpop.f32.mrb[0].mxu0
        %v2799 = vadd.f32 0.0, %v2798
        %v2800 = vpop.f32.mrb[0].mxu0
        %v2801 = vpop.f32.mrb[0].mxu0
        %v2802 = vadd.f32 0.0, %v2801
        %v2803 = vpop.f32.mrb[0].mxu0
        %2804 = vmatprep.mubr.bf16.mxu0 %v2729
        %2805 = vmatmul.mubr.bf16.gmra.mrb[0].mxu0 %v2728
        %v2806 = vpop.f32.mrb[0].mxu0
        %v2807 = vadd.f32 0.0, %v2806
        %v2808 = vpop.f32.mrb[0].mxu0
        %v2809 = vpop.f32.mrb[0].mxu0
        %v2810 = vadd.f32 0.0, %v2809
        %v2811 = vpop.f32.mrb[0].mxu0
        %2812 = vmatprep.mubr.bf16.mxu0 %v2731
        %2813 = vmatmul.mubr.bf16.gmra.mrb[0].mxu0 %v2730
        %v2814 = vpop.f32.mrb[0].mxu0
        %v2815 = vadd.f32 0.0, %v2814
        %v2816 = vpop.f32.mrb[0].mxu0
        %v2817 = vpop.f32.mrb[0].mxu0
        %v2818 = vadd.f32 0.0, %v2817
        %v2819 = vpop.f32.mrb[0].mxu0
        %2820 = vmatprep.mubr.bf16.mxu0 %v2733
        %2821 = vmatmul.mubr.bf16.gmra.mrb[0].mxu0 %v2732
        %v2822 = vpop.f32.mrb[0].mxu0
        %v2823 = vadd.f32 0.0, %v2822
        %v2824 = vpop.f32.mrb[0].mxu0
        %v2825 = vpop.f32.mrb[0].mxu0
        %v2826 = vadd.f32 0.0, %v2825
        %v2827 = vpop.f32.mrb[0].mxu0
        %2828 = vmatprep.mubr.bf16.mxu0 %v2735
        %2829 = vmatmul.mubr.bf16.gmra.mrb[0].mxu0 %v2734
        %v2830 = vpop.f32.mrb[0].mxu0
        %v2831 = vadd.f32 0.0, %v2830
        %v2832 = vpop.f32.mrb[0].mxu0
        %v2833 = vpop.f32.mrb[0].mxu0
        %v2834 = vadd.f32 0.0, %v2833
        %v2835 = vpop.f32.mrb[0].mxu0
        %2836 = vmatprep.mubr.bf16.mxu0 %v2737
        %2837 = vmatmul.mubr.bf16.gmra.mrb[0].mxu0 %v2736
        %v2838 = vpop.f32.mrb[0].mxu0
        %v2839 = vadd.f32 0.0, %v2838
        %v2840 = vpop.f32.mrb[0].mxu0
        %v2841 = vpop.f32.mrb[0].mxu0
        %v2842 = vadd.f32 0.0, %v2841
        %v2843 = vpop.f32.mrb[0].mxu0
        %2844 = vmatprep.mubr.bf16.mxu0 %v2739
        %2845 = vmatmul.mubr.bf16.gmra.mrb[0].mxu0 %v2738
        %v2846 = vpop.f32.mrb[0].mxu0
        %v2847 = vadd.f32 0.0, %v2846
        %v2848 = vpop.f32.mrb[0].mxu0
        %v2849 = vpop.f32.mrb[0].mxu0
        %v2850 = vadd.f32 0.0, %v2849
        %v2851 = vpop.f32.mrb[0].mxu0
        %2852 = vdwg.mxu0
        %2854 = vset.pattern.permute.xlu0 0
        %2855 = vperm.xlu0 %2854, %v2644
        %v2856 = vpop.permute.xlu0 %2855
        %2859 = vset.pattern.permute.xlu0 0
        %2860 = vperm.xlu0 %2859, %v2645
        %v2861 = vpop.permute.xlu0 %2860
        %2864 = vset.pattern.permute.xlu0 0
        %2865 = vperm.xlu0 %2864, %v2646
        %v2866 = vpop.permute.xlu0 %2865
        %2869 = vset.pattern.permute.xlu0 0
        %2870 = vperm.xlu0 %2869, %v2647
        %v2871 = vpop.permute.xlu0 %2870
        %2874 = vset.pattern.permute.xlu0 0
        %2875 = vperm.xlu0 %2874, %v2648
        %v2876 = vpop.permute.xlu0 %2875
        %2879 = vset.pattern.permute.xlu0 0
        %2880 = vperm.xlu0 %2879, %v2649
        %v2881 = vpop.permute.xlu0 %2880
        %2884 = vset.pattern.permute.xlu0 0
        %2885 = vperm.xlu0 %2884, %v2650
        %v2886 = vpop.permute.xlu0 %2885
        %2889 = vset.pattern.permute.xlu0 0
        %2890 = vperm.xlu0 %2889, %v2651
        %v2891 = vpop.permute.xlu0 %2890
        %2894 = vset.pattern.permute.xlu0 0
        %2895 = vperm.xlu0 %2894, %v2652
        %v2896 = vpop.permute.xlu0 %2895
        %2899 = vset.pattern.permute.xlu0 0
        %2900 = vperm.xlu0 %2899, %v2653
        %v2901 = vpop.permute.xlu0 %2900
        %2904 = vset.pattern.permute.xlu0 0
        %2905 = vperm.xlu0 %2904, %v2654
        %v2906 = vpop.permute.xlu0 %2905
        %2909 = vset.pattern.permute.xlu0 0
        %2910 = vperm.xlu0 %2909, %v2655
        %v2911 = vpop.permute.xlu0 %2910
        %2914 = vset.pattern.permute.xlu0 0
        %2915 = vperm.xlu0 %2914, %v2656
        %v2916 = vpop.permute.xlu0 %2915
        %2919 = vset.pattern.permute.xlu0 0
        %2920 = vperm.xlu0 %2919, %v2657
        %v2921 = vpop.permute.xlu0 %2920
        %2924 = vset.pattern.permute.xlu0 0
        %2925 = vperm.xlu0 %2924, %v2658
        %v2926 = vpop.permute.xlu0 %2925
        %2929 = vset.pattern.permute.xlu0 0
        %2930 = vperm.xlu0 %2929, %v2659
        %v2931 = vpop.permute.xlu0 %2930
        %v2933 = vmul.f32 %v2856, %v2791
        %v2934 = vmul.f32 %v2861, %v2794
        %v2935 = vmul.f32 %v2866, %v2799
        %v2936 = vmul.f32 %v2871, %v2802
        %v2937 = vmul.f32 %v2876, %v2807
        %v2938 = vmul.f32 %v2881, %v2810
        %v2939 = vmul.f32 %v2886, %v2815
        %v2940 = vmul.f32 %v2891, %v2818
        %v2941 = vmul.f32 %v2896, %v2823
        %v2942 = vmul.f32 %v2901, %v2826
        %v2943 = vmul.f32 %v2906, %v2831
        %v2944 = vmul.f32 %v2911, %v2834
        %v2945 = vmul.f32 %v2916, %v2839
        %v2946 = vmul.f32 %v2921, %v2842
        %v2947 = vmul.f32 %v2926, %v2847
        %v2948 = vmul.f32 %v2931, %v2850
        %v2949 = vadd.f32 %v2385, %v2933
        %v2950 = vadd.f32 %v2386, %v2934
        %v2951 = vadd.f32 %v2387, %v2935
        %v2952 = vadd.f32 %v2388, %v2936
        %v2953 = vadd.f32 %v2389, %v2937
        %v2954 = vadd.f32 %v2390, %v2938
        %v2955 = vadd.f32 %v2391, %v2939
        %v2956 = vadd.f32 %v2392, %v2940
        %v2957 = vadd.f32 %v2393, %v2941
        %v2958 = vadd.f32 %v2394, %v2942
        %v2959 = vadd.f32 %v2395, %v2943
        %v2960 = vadd.f32 %v2396, %v2944
        %v2961 = vadd.f32 %v2397, %v2945
        %v2962 = vadd.f32 %v2398, %v2946
        %v2963 = vadd.f32 %v2399, %v2947
        %v2964 = vadd.f32 %v2400, %v2948
        %v2965 = vld [vmem:[%s5] sm:$0x1]
        %v2967 = vlaneseq
        %v2968 = vshrl.u32 %v2967, 7
        %v2969 = vsub.s32 0, %v2968
        %v2970 = vrot.slane %v2965, %v2969
        %v2972 = vadd.f32 %v2949, %v2970
        %v2973 = vadd.f32 %v2950, %v2970
        %v2974 = vadd.f32 %v2951, %v2970
        %v2975 = vadd.f32 %v2952, %v2970
        %v2976 = vadd.f32 %v2953, %v2970
        %v2977 = vadd.f32 %v2954, %v2970
        %v2978 = vadd.f32 %v2955, %v2970
        %v2979 = vadd.f32 %v2956, %v2970
        %v2980 = vadd.f32 %v2957, %v2970
        %v2981 = vadd.f32 %v2958, %v2970
        %v2982 = vadd.f32 %v2959, %v2970
        %v2983 = vadd.f32 %v2960, %v2970
        %v2984 = vadd.f32 %v2961, %v2970
        %v2985 = vadd.f32 %v2962, %v2970
        %v2986 = vadd.f32 %v2963, %v2970
        %v2987 = vadd.f32 %v2964, %v2970
        %v2988 = vmax.f32 %v2972, 0.0
        %v2989 = vmax.f32 %v2973, 0.0
        %v2990 = vmax.f32 %v2974, 0.0
        %v2991 = vmax.f32 %v2975, 0.0
        %v2992 = vmax.f32 %v2976, 0.0
        %v2993 = vmax.f32 %v2977, 0.0
        %v2994 = vmax.f32 %v2978, 0.0
        %v2995 = vmax.f32 %v2979, 0.0
        %v2996 = vmax.f32 %v2980, 0.0
        %v2997 = vmax.f32 %v2981, 0.0
        %v2998 = vmax.f32 %v2982, 0.0
        %v2999 = vmax.f32 %v2983, 0.0
        %v3000 = vmax.f32 %v2984, 0.0
        %v3001 = vmax.f32 %v2985, 0.0
        %v3002 = vmax.f32 %v2986, 0.0
        %v3003 = vmax.f32 %v2987, 0.0
        %v3004 = vpack.c.bf16 %v2989, %v2988
        %v3005 = vpack.c.bf16 %v2991, %v2990
        %v3006 = vpack.c.bf16 %v2993, %v2992
        %v3007 = vpack.c.bf16 %v2995, %v2994
        %v3008 = vpack.c.bf16 %v2997, %v2996
        %v3009 = vpack.c.bf16 %v2999, %v2998
        %v3010 = vpack.c.bf16 %v3001, %v3000
        %v3011 = vpack.c.bf16 %v3003, %v3002
        %v3020 = vunpack.c.l.b16 %v3004
        %v3021 = vunpack.c.h.b16 %v3004
        %v3022 = vunpack.c.l.b16 %v3005
        %v3023 = vunpack.c.h.b16 %v3005
        %v3024 = vunpack.c.l.b16 %v3006
        %v3025 = vunpack.c.h.b16 %v3006
        %v3026 = vunpack.c.l.b16 %v3007
        %v3027 = vunpack.c.h.b16 %v3007
        %v3028 = vunpack.c.l.b16 %v3008
        %v3029 = vunpack.c.h.b16 %v3008
        %v3030 = vunpack.c.l.b16 %v3009
        %v3031 = vunpack.c.h.b16 %v3009
        %v3032 = vunpack.c.l.b16 %v3010
        %v3033 = vunpack.c.h.b16 %v3010
        %v3034 = vunpack.c.l.b16 %v3011
        %v3035 = vunpack.c.h.b16 %v3011
        %v3036 = vpack.c.b16 %v3020, %v3020
        %v3037 = vpack.c.b16 %v3021, %v3021
        %v3038 = vpack.c.b16 %v3022, %v3022
        %v3039 = vpack.c.b16 %v3023, %v3023
        %v3040 = vpack.c.b16 %v3024, %v3024
        %v3041 = vpack.c.b16 %v3025, %v3025
        %v3042 = vpack.c.b16 %v3026, %v3026
        %v3043 = vpack.c.b16 %v3027, %v3027
        %v3044 = vpack.c.b16 %v3028, %v3028
        %v3045 = vpack.c.b16 %v3029, %v3029
        %v3046 = vpack.c.b16 %v3030, %v3030
        %v3047 = vpack.c.b16 %v3031, %v3031
        %v3048 = vpack.c.b16 %v3032, %v3032
        %v3049 = vpack.c.b16 %v3033, %v3033
        %v3050 = vpack.c.b16 %v3034, %v3034
        %v3051 = vpack.c.b16 %v3035, %v3035
        %3068 = vst [vmem:[%s716] sm:$0xf] %v3036
        %3069 = vst [vmem:[%s716 + $0x4] sm:$0xf] %v3037
        %3070 = vst [vmem:[%s716 + $0x8] sm:$0xf] %v3038
        %3071 = vst [vmem:[%s716 + $0xc] sm:$0xf] %v3039
        %3072 = vst [vmem:[%s716 + $0x10] sm:$0xf] %v3040
        %3073 = vst [vmem:[%s716 + $0x14] sm:$0xf] %v3041
        %3074 = vst [vmem:[%s716 + $0x18] sm:$0xf] %v3042
        %3075 = vst [vmem:[%s716 + $0x1c] sm:$0xf] %v3043
        %3076 = vst [vmem:[%s716 + $0x20] sm:$0xf] %v3044
        %3077 = vst [vmem:[%s716 + $0x24] sm:$0xf] %v3045
        %3078 = vst [vmem:[%s716 + $0x28] sm:$0xf] %v3046
        %3079 = vst [vmem:[%s716 + $0x2c] sm:$0xf] %v3047
        %3080 = vst [vmem:[%s716 + $0x30] sm:$0xf] %v3048
        %3081 = vst [vmem:[%s716 + $0x34] sm:$0xf] %v3049
        %3082 = vst [vmem:[%s716 + $0x38] sm:$0xf] %v3050
        %3083 = vst [vmem:[%s716 + $0x3c] sm:$0xf] %v3051
        %s3084 = sand.u32 %s164, 1
        %s3085 = scalar_lea.sflag [#allocation5], %s3084
        %s3086 = sand.u32 %s164, 1
        %s3087 = smul.addr %s3086, 64
        %s3088 = scalar_lea.vmem [#allocation4], %s3087
        // Predicated region
        $region121: #{tpu_custom_call.1} parent=111 // pred_check
          %p3089 = pneg %p174
        $region122: #{tpu_custom_call.1} parent=111 // pred_check_branch
          %3091 = sbr.rel (%p3089) target = $region124
        $region123: #{tpu_custom_call.1} parent=111 // pred_region
          %s3092 = smul.u32 16, %s20
          %s3094 = ssub.s32 1024, 1024
          %3095 = vsyncadd %s3085, %s3094
          %s3096 = smul.addr %s3092, 64
          %s3097 = scalar_lea.hbm %s6, %s3096
          %s3098 = sshll.u32 %s3088, 4
          %s3099 = int_to_ptr.vmem [resolvable:$true] %s3098
          %3104 = dma.vmem_to_hbm [thread:$0]  %s3099, 1024, %s3097, %s3085, 64, 64, 4
        $region124: #{tpu_custom_call.1} parent=111 // pred_fallthru
          _
      $region112: #{tpu_custom_call.1} parent=5 // pred_fallthru
        _
      %p3105 = scmp.le.s32.totalorder 2, %s15
      // Predicated region
      $region125: #{tpu_custom_call.1} parent=5 // pred_check
        %p3106 = pneg %p3105
      $region126: #{tpu_custom_call.1} parent=5 // pred_check_branch
        %3108 = sbr.rel (%p3106) target = $region128
      $region127: #{tpu_custom_call.1} parent=5 // pred_region
        %s3109 = ssub.s32 %s15, 2
        // Predicated region
        $region129: #{tpu_custom_call.1} parent=127 // pred_check
          %p3110 = pneg %p180
        $region130: #{tpu_custom_call.1} parent=127 // pred_check_branch
          %3112 = sbr.rel (%p3110) target = $region132
        $region131: #{tpu_custom_call.1} parent=127 // pred_region
          %s3113 = sand.u32 %s165, 1
          %s3114 = scalar_lea.sflag [#allocation5], %s3113
          %s3115 = sand.u32 %s165, 1
          %s3116 = smul.addr %s3115, 64
          %s3117 = scalar_lea.vmem [#allocation4], %s3116
          %3118 = dma.done %s3114, 1024
        $region132: #{tpu_custom_call.1} parent=127 // pred_fallthru
          _
      $region128: #{tpu_custom_call.1} parent=5 // pred_fallthru
        _
    $region6: #{tpu_custom_call.1} parent=1 // loop_footer
      %s19 = sadd.s32 1, %s15
    $region7: #{tpu_custom_call.1} parent=1 // loop_footer_branch
      %14 = sbr.rel target = $region3
    $region8: #{tpu_custom_call.1} parent=1 // loop_exit
      _
    %3119 = vsyncpa [#allocation5], 1
    %s3120 = scalar_lea.sflag [#allocation5], 1
    %3121 = vsyncpa %s3120, 1

</llo_original>
